<compile_context>
chip_gen: v6e
topology: v6e:2x2x1
jax: 0.10.0
libtpu: 0.0.40
codegen_flags: <defaults>
</compile_context>

<pallas_src>
import functools
import math

import numpy as np
import jax
import jax.numpy as jnp
from jax.experimental import pallas as pl
from jax.experimental.pallas import tpu as pltpu


def _round_up(x, m):
    return -(-x // m) * m


# ----------------------------------------------------------------------------
# Pallas kernel 1: K-tiled bf16 matmul + bias + activation (+ fused residual)
# ----------------------------------------------------------------------------
def _mm_bias_act_kernel(*refs, act, nk, has_res):
    if nk > 1:
        acc_ref = refs[-1]
        refs = refs[:-1]
    else:
        acc_ref = None
    if has_res:
        p_ref, w_ref, b_ref, r_ref, o_ref = refs
    else:
        p_ref, w_ref, b_ref, o_ref = refs
        r_ref = None

    k = pl.program_id(2)
    prod = jnp.dot(p_ref[...], w_ref[...], preferred_element_type=jnp.float32)

    def epilogue(y):
        # epilogue kept in f32 (v5e has no bf16 VPU/EUP)
        y = y + b_ref[...]
        if r_ref is not None:
            y = y + r_ref[...].astype(jnp.float32)
        if act == "relu":
            y = jnp.maximum(y, 0.0)
        elif act == "silu":
            y = y * jax.nn.sigmoid(y)
        o_ref[...] = y.astype(o_ref.dtype)

    if nk == 1:
        epilogue(prod)                           # no accumulator round-trip
    else:
        @pl.when(k == 0)
        def _():
            acc_ref[...] = prod

        @pl.when(jnp.logical_and(k > 0, k < nk - 1))
        def _():
            acc_ref[...] += prod

        @pl.when(k == nk - 1)
        def _():
            epilogue(acc_ref[...] + prod)        # fold last partial into epilogue


def pallas_matmul_bias_act(p, w, bias, act="none", res=None, tm=512, tk=1024,
                           out_dtype=jnp.bfloat16):
    """p: (M, K) activations, w: (K, N) weights (BN scale already folded),
    bias: (N,) f32.  Returns ((M, Np) out_dtype, Np) with Np = round_up(N, 128)."""
    M, K = p.shape
    _, N = w.shape
    Np = _round_up(N, 128)                       # lane-dense stores (no vst.msk)
    if Np != N:
        w = jnp.pad(w, ((0, 0), (0, Np - N)))
        bias = jnp.pad(bias, (0, Np - N))
    p = p.astype(jnp.bfloat16)                   # bf16 MXU inputs, f32 accumulate

    if K > tk:                                   # tile the contraction axis
        TK = tk
        Kp = _round_up(K, TK)
        if Kp != K:
            p = jnp.pad(p, ((0, 0), (0, Kp - K)))
            w = jnp.pad(w, ((0, Kp - K), (0, 0)))
        nk = Kp // TK
    else:
        TK = K
        nk = 1
    w = w.astype(jnp.bfloat16)
    bias = bias.reshape(1, Np).astype(jnp.float32)

    if M <= tm:                                  # small M => block == full dim
        TM, Mp = M, M
    else:                                        # pad M so no ragged OOB tail
        TM = tm
        Mp = _round_up(M, TM)
        if Mp != M:
            p = jnp.pad(p, ((0, Mp - M), (0, 0)))

    # extra parallel N axis for wide layers (keeps a 2nd TensorCore busy on v7x)
    TN = 256 if (Np >= 512 and Np % 256 == 0) else Np
    grid = (Mp // TM, Np // TN, nk)

    in_specs = [
        pl.BlockSpec((TM, TK), lambda i, j, k: (i, k)),
        pl.BlockSpec((TK, TN), lambda i, j, k: (k, j)),
        pl.BlockSpec((1, TN), lambda i, j, k: (0, j)),
    ]
    operands = [p, w, bias]
    if res is not None:
        res = res.astype(jnp.bfloat16)
        if res.shape[1] != Np:                   # pad residual to lane-dense Np
            res = jnp.pad(res, ((0, 0), (0, Np - res.shape[1])))
        if res.shape[0] != Mp:
            res = jnp.pad(res, ((0, Mp - res.shape[0]), (0, 0)))
        in_specs.append(pl.BlockSpec((TM, TN), lambda i, j, k: (i, j)))
        operands.append(res)

    scratch = [pltpu.VMEM((TM, TN), jnp.float32)] if nk > 1 else []
    out = pl.pallas_call(
        functools.partial(_mm_bias_act_kernel, act=act, nk=nk,
                          has_res=res is not None),
        out_shape=jax.ShapeDtypeStruct((Mp, Np), out_dtype),
        grid=grid,
        in_specs=in_specs,
        out_specs=pl.BlockSpec((TM, TN), lambda i, j, k: (i, j)),
        scratch_shapes=scratch,
        compiler_params=pltpu.CompilerParams(
            dimension_semantics=("parallel", "parallel", "arbitrary"),
            vmem_limit_bytes=32 * 1024 * 1024,
        ),
    )(*operands)
    if Mp != M:
        out = out[:M]
    return out, Np


# ----------------------------------------------------------------------------
# Pallas kernel 2: per-camera fisheye (MEI) unprojection + ego transform + mask
#   grid = (camera, row-slab tile); each invocation handles an (RT, 128) slab.
# ----------------------------------------------------------------------------
def _geom_kernel(xs_ref, ys_ref, ds_ref, gx_ref, gy_ref, cam_ref,
                 geom_ref, *, downsample, radius2, iters):
    bn = pl.program_id(0)
    g1 = cam_ref[bn, 0]; g2 = cam_ref[bn, 1]; u0 = cam_ref[bn, 2]; v0 = cam_ref[bn, 3]
    k1 = cam_ref[bn, 4]; k2 = cam_ref[bn, 5]; p1 = cam_ref[bn, 6]; p2 = cam_ref[bn, 7]
    xi = cam_ref[bn, 8]
    r00 = cam_ref[bn, 9]; r01 = cam_ref[bn, 10]; r02 = cam_ref[bn, 11]
    r10 = cam_ref[bn, 12]; r11 = cam_ref[bn, 13]; r12 = cam_ref[bn, 14]
    r20 = cam_ref[bn, 15]; r21 = cam_ref[bn, 16]; r22 = cam_ref[bn, 17]
    tx = cam_ref[bn, 18]; ty = cam_ref[bn, 19]; tz = cam_ref[bn, 20]

    xs = xs_ref[...]          # (RT, 128) lane-dense coordinate slabs
    ys = ys_ref[...]
    ds = ds_ref[...]

    ppx = (xs - u0) / g1
    ppy = (ys - v0) / g2
    pux, puy = ppx, ppy
    for _ in range(iters):    # fixed-point radial/tangential undistortion (VPU)
        r2 = pux * pux + puy * puy
        r4 = r2 * r2
        inv = 1.0 / (1.0 + k1 * r2 + k2 * r4)          # one divide / iteration
        nx_ = (ppx - 2.0 * p1 * pux * puy - p2 * (r2 + 2.0 * pux * pux)) * inv
        ny_ = (ppy - 2.0 * p2 * pux * puy - p1 * (r2 + 2.0 * puy * puy)) * inv
        pux, puy = nx_, ny_

    r2 = pux * pux + puy * puy
    a = r2 + 1.0
    b = 2.0 * xi * r2
    c = xi * xi * r2 - 1.0
    disc = jnp.sqrt(jnp.maximum(b * b - 4.0 * a * c, 0.0))   # NaN-safe for xi>1
    zs = (disc - b) * (0.5 / a)
    zx = zs + xi
    X = pux * zx
    Y = puy * zx
    Z = zs
    scale = ds * jax.lax.rsqrt(jnp.maximum(X * X + Y * Y + Z * Z, 1e-24))
    X = X * scale
    Y = Y * scale
    Z = Z * scale

    px = r00 * X + r01 * Y + r02 * Z + tx
    py = r10 * X + r11 * Y + r12 * Z + ty
    pz = r20 * X + r21 * Y + r22 * Z + tz

    u0d = jnp.floor(u0 / downsample)
    v0d = jnp.floor(v0 / downsample)
    dist2 = (gx_ref[...] - u0d) ** 2 + (gy_ref[...] - v0d) ** 2
    m = dist2 >= radius2

    px = jnp.where(m, -1000.0, px)
    py = jnp.where(m, -1000.0, py)
    pz = jnp.where(m, -1000.0, pz)
    px = -px                  # points_ego[..., 0] *= -1 after mask fill (torch order)

    geom_ref[0, 0] = px
    geom_ref[0, 1] = py
    geom_ref[0, 2] = pz


def pallas_geometry(xs, ys, ds, gx, gy, cam, R, RT, downsample, radius2):
    BN = cam.shape[0]
    geom = pl.pallas_call(
        functools.partial(_geom_kernel, downsample=float(downsample),
                          radius2=float(radius2), iters=20),
        out_shape=jax.ShapeDtypeStruct((BN, 3, R, 128), jnp.float32),
        grid=(BN, R // RT),
        in_specs=[pl.BlockSpec((RT, 128), lambda i, r: (r, 0))] * 5
        + [pl.BlockSpec(memory_space=pltpu.MemorySpace.SMEM)],
        out_specs=pl.BlockSpec((1, 3, RT, 128), lambda i, r: (i, 0, r, 0)),
        compiler_params=pltpu.CompilerParams(
            dimension_semantics=("parallel", "parallel")),
    )(xs, ys, ds, gx, gy, cam)
    return geom


# ----------------------------------------------------------------------------
# Pallas kernel 3: depth softmax x feature outer product ("lift") + circle mask
#   consumes the depthnet rows (BN, HW, 128) directly and emits the splat-ready
#   (BN, D, HW, 128) bf16 layout.  keep is (BN, HW, 1) — identical across D.
# ----------------------------------------------------------------------------
def _lift_kernel(dnet_ref, keep_ref, o_ref, *, D, C):
    d = dnet_ref[0].astype(jnp.float32)          # (HWT, Ncp), channels on lanes
    logits = d[:, :D]                            # (HWT, D)
    m = jnp.max(logits, axis=-1, keepdims=True)
    e = jnp.exp(logits - m)
    depth = e * pl.reciprocal(jnp.sum(e, axis=-1, keepdims=True), approx=True)
    feat = d[:, D:D + C] * keep_ref[0]           # zero masked pixels once (no .T)
    padc = d.shape[-1] - C
    if padc:
        feat = jnp.concatenate(
            [feat, jnp.zeros((feat.shape[0], padc), feat.dtype)], axis=-1)
    for di in range(D):                          # D is small; static unroll
        o_ref[0, di] = (depth[:, di:di + 1] * feat).astype(o_ref.dtype)


def pallas_lift(dnet_rows, keep, D, C):
    BN, HW, Ncp = dnet_rows.shape
    HWT = HW
    for cand in (512, 256, 128, 64):
        if HW % cand == 0 and HW >= cand:
            HWT = cand
            break
    return pl.pallas_call(
        functools.partial(_lift_kernel, D=D, C=C),
        out_shape=jax.ShapeDtypeStruct((BN, D, HW, Ncp), jnp.bfloat16),
        grid=(BN, HW // HWT),
        in_specs=[
            pl.BlockSpec((1, HWT, Ncp), lambda i, h: (i, h, 0)),
            pl.BlockSpec((1, HWT, 1), lambda i, h: (i, h, 0)),
        ],
        out_specs=pl.BlockSpec((1, D, HWT, Ncp), lambda i, h: (i, 0, h, 0)),
        compiler_params=pltpu.CompilerParams(
            dimension_semantics=("parallel", "parallel")),
    )(dnet_rows, keep.astype(jnp.float32))


# ----------------------------------------------------------------------------
# Pallas kernel 4: voxel splat (scatter-add) as tiled one-hot bf16 MXU matmul
# ----------------------------------------------------------------------------
# TODO(synk): a segment-sorted variant (scalar-prefetched per-voxel-tile point
# offsets via PrefetchScalarGridSpec) would drop work from O(V*Np) to ~O(Np).
def _splat_kernel(idx_ref, f_ref, o_ref, *refs, TV, nk):
    acc_ref = refs[0] if nk > 1 else None
    vi = pl.program_id(0)
    ki = pl.program_id(1)
    idx = idx_ref[...] - vi * TV                          # local voxel ids, -1=dropped
    iota = jax.lax.broadcasted_iota(jnp.int32, (TV, idx.shape[1]), 0)
    onehot = (iota == idx).astype(jnp.bfloat16)           # (TV, TP)
    prod = jnp.dot(onehot, f_ref[...], preferred_element_type=jnp.float32)

    if nk == 1:
        o_ref[...] = prod
    else:
        @pl.when(ki == 0)
        def _():
            acc_ref[...] = prod

        @pl.when(jnp.logical_and(ki > 0, ki < nk - 1))
        def _():
            acc_ref[...] += prod

        @pl.when(ki == nk - 1)
        def _():
            o_ref[...] = acc_ref[...] + prod


def pallas_splat(vox_idx, feats, V):
    Np0, Cp = feats.shape
    TP = 1024 if Np0 >= 1024 else _round_up(Np0, 128)     # fixed tile; pad points
    Npad = _round_up(Np0, TP)
    vox_idx = vox_idx.astype(jnp.int32)
    feats = feats.astype(jnp.bfloat16)
    if Npad != Np0:
        vox_idx = jnp.concatenate(
            [vox_idx, jnp.full((Npad - Np0,), -1, jnp.int32)])
        feats = jnp.pad(feats, ((0, Npad - Np0), (0, 0)))
    nk = Npad // TP

    TV = 512
    if V < 2 * TV:                                        # keep >=2 parallel blocks
        TV = max(8, _round_up(max(V // 2, 1), 8))
    Vp = _round_up(V, TV)

    scratch = [pltpu.VMEM((TV, Cp), jnp.float32)] if nk > 1 else []
    out = pl.pallas_call(
        functools.partial(_splat_kernel, TV=TV, nk=nk),
        out_shape=jax.ShapeDtypeStruct((Vp, Cp), jnp.float32),
        grid=(Vp // TV, nk),
        in_specs=[
            pl.BlockSpec((1, TP), lambda v, k: (0, k)),
            pl.BlockSpec((TP, Cp), lambda v, k: (k, 0)),
        ],
        out_specs=pl.BlockSpec((TV, Cp), lambda v, k: (v, 0)),
        scratch_shapes=scratch,
        compiler_params=pltpu.CompilerParams(
            dimension_semantics=("parallel", "arbitrary")),
    )(vox_idx.reshape(1, Npad), feats)
    return out[:V]


# ----------------------------------------------------------------------------
# Glue: im2col, conv wrapper, bilinear upsample, parameter init
# ----------------------------------------------------------------------------
def im2col(x, kh, kw, stride, pad):
    # TODO(synk): replace with a fused halo-DMA Pallas conv kernel; im2col still
    # inflates activation HBM read traffic by kh*kw (now at bf16 width).
    Bn, C, H, W = x.shape
    xp = jnp.pad(x, ((0, 0), (0, 0), (pad, pad), (pad, pad)))
    Ho = (H + 2 * pad - kh) // stride + 1
    Wo = (W + 2 * pad - kw) // stride + 1
    cols = []
    for i in range(kh):
        for j in range(kw):
            cols.append(xp[:, :, i:i + stride * Ho:stride, j:j + stride * Wo:stride])
    patches = jnp.stack(cols, axis=2)                     # (Bn, C, kh*kw, Ho, Wo)
    patches = patches.transpose(0, 3, 4, 1, 2).reshape(Bn * Ho * Wo, C * kh * kw)
    return patches, Ho, Wo


def apply_conv(x, prm, stride=1, act="none", res=None, rows_out=False,
               out_dtype=jnp.bfloat16):
    w = prm["w"]
    cout, cin, kh, kw = w.shape
    pad = kh // 2
    patches, Ho, Wo = im2col(x, kh, kw, stride, pad)
    # fold the BN scale into the weight columns => epilogue is bias-only
    wmat = w.reshape(cout, cin * kh * kw).T * prm["s"][None, :]
    out_rows, Np = pallas_matmul_bias_act(patches, wmat, prm["b"], act=act,
                                          res=res, out_dtype=out_dtype)
    Bn = x.shape[0]
    if rows_out:
        return out_rows, Ho, Wo, Np                       # (Bn*Ho*Wo, Np) rows layout
    out = out_rows[:, :cout].reshape(Bn, Ho, Wo, cout).transpose(0, 3, 1, 2)
    return out


def _interp_matrix(n_in, n_out):
    m = np.zeros((n_out, n_in), np.float32)
    if n_in == 1:
        m[:, 0] = 1.0
        return jnp.asarray(m)
    pos = np.arange(n_out, dtype=np.float64) * (n_in - 1) / (n_out - 1)
    lo = np.clip(np.floor(pos).astype(np.int64), 0, n_in - 2)
    frac = (pos - lo).astype(np.float32)
    m[np.arange(n_out), lo] = 1.0 - frac
    m[np.arange(n_out), lo + 1] += frac
    return jnp.asarray(m)


def upsample_bilinear(x, scale):
    # glue: bilinear (align_corners=True) as separable linear interpolation maps
    _, _, H, W = x.shape
    Mh = _interp_matrix(H, H * scale)
    Mw = _interp_matrix(W, W * scale)
    y = jnp.einsum("ih,jw,bchw->bcij", Mh, Mw, x.astype(jnp.float32))
    return y.astype(x.dtype)


def make_conv_bn(key, cin, cout, k):
    k1, k2, k3 = jax.random.split(key, 3)
    w = jax.random.normal(k1, (cout, cin, k, k), jnp.float32) * math.sqrt(2.0 / (cin * k * k)) * 0.7
    gamma = 1.0 + 0.1 * jax.random.normal(k2, (cout,), jnp.float32)
    beta = 0.02 * jax.random.normal(k3, (cout,), jnp.float32)
    # eval-mode BN folded (running_mean=0, running_var=1, eps=1e-5)
    return {"w": w, "s": gamma / jnp.sqrt(1.0 + 1e-5), "b": beta}


def make_conv_bias(key, cin, cout, k):
    k1, k2 = jax.random.split(key)
    w = jax.random.normal(k1, (cout, cin, k, k), jnp.float32) * math.sqrt(1.0 / (cin * k * k))
    b = 0.02 * jax.random.normal(k2, (cout,), jnp.float32)
    return {"w": w, "s": jnp.ones((cout,), jnp.float32), "b": b}


def init_params(key, D, camC, outC):
    keys = iter(jax.random.split(key, 64))
    cam = {
        "stem": make_conv_bn(next(keys), 3, 32, 3),
        "b1": make_conv_bn(next(keys), 32, 24, 3),
        "b2": make_conv_bn(next(keys), 24, 40, 3),
        "b3": make_conv_bn(next(keys), 40, 112, 3),      # reduction_4 stand-in (/16)
        "b4": make_conv_bn(next(keys), 112, 320, 3),     # reduction_5 stand-in (/32)
        "up1_c1": make_conv_bn(next(keys), 320 + 112, 512, 3),
        "up1_c2": make_conv_bn(next(keys), 512, 512, 3),
        "depthnet": make_conv_bias(next(keys), 512, D + camC, 1),
    }

    def block(k, cin, cout, stride):
        k1, k2, k3 = jax.random.split(k, 3)
        prm = {"c1": make_conv_bn(k1, cin, cout, 3), "c2": make_conv_bn(k2, cout, cout, 3)}
        if stride != 1 or cin != cout:
            prm["down"] = make_conv_bn(k3, cin, cout, 1)
        return prm

    bev = {
        "conv1": make_conv_bn(next(keys), camC, 64, 7),
        "l1b0": block(next(keys), 64, 64, 1),
        "l1b1": block(next(keys), 64, 64, 1),
        "l2b0": block(next(keys), 64, 128, 2),
        "l2b1": block(next(keys), 128, 128, 1),
        "l3b0": block(next(keys), 128, 256, 2),
        "l3b1": block(next(keys), 256, 256, 1),
        "up1_c1": make_conv_bn(next(keys), 64 + 256, 256, 3),
        "up1_c2": make_conv_bn(next(keys), 256, 256, 3),
        "up2_c1": make_conv_bn(next(keys), 256, 128, 3),
        "up2_c2": make_conv_bias(next(keys), 128, outC, 1),
    }
    return {"cam": cam, "bev": bev}


def cam_encode(p, x):
    x = x.astype(jnp.bfloat16)                            # bf16 activations throughout
    h = apply_conv(x, p["stem"], stride=2, act="silu")
    h = apply_conv(h, p["b1"], stride=2, act="silu")
    h = apply_conv(h, p["b2"], stride=2, act="silu")
    r4 = apply_conv(h, p["b3"], stride=2, act="silu")
    r5 = apply_conv(r4, p["b4"], stride=2, act="silu")
    u = upsample_bilinear(r5, 2)
    u = jnp.concatenate([r4, u], axis=1)                  # cat([x2, up(x1)]) as in Up
    u = apply_conv(u, p["up1_c1"], act="relu")
    u = apply_conv(u, p["up1_c2"], act="relu")
    # 1x1 depthnet returned in rows layout (BN*HW, 128) -> no NHWC/NCHW round-trip
    return apply_conv(u, p["depthnet"], act="none", rows_out=True)


def basic_block(x, prm, stride):
    out = apply_conv(x, prm["c1"], stride=stride, act="relu")
    if "down" in prm:
        idn = apply_conv(x, prm["down"], stride=stride, act="none")
    else:
        idn = x
    Bn, Ci, Hi, Wi = idn.shape
    res_rows = idn.transpose(0, 2, 3, 1).reshape(Bn * Hi * Wi, Ci)
    # residual add + ReLU fused into the second conv's matmul epilogue
    return apply_conv(out, prm["c2"], stride=1, act="relu", res=res_rows)


def bev_encode(p, x):
    x = x.astype(jnp.bfloat16)
    h = apply_conv(x, p["conv1"], stride=2, act="relu")
    h = basic_block(h, p["l1b0"], 1)
    x1 = basic_block(h, p["l1b1"], 1)
    h = basic_block(x1, p["l2b0"], 2)
    h = basic_block(h, p["l2b1"], 1)
    h = basic_block(h, p["l3b0"], 2)
    h = basic_block(h, p["l3b1"], 1)
    u = upsample_bilinear(h, 4)
    u = jnp.concatenate([x1, u], axis=1)
    u = apply_conv(u, p["up1_c1"], act="relu")
    u = apply_conv(u, p["up1_c2"], act="relu")
    u = upsample_bilinear(u, 2)
    u = apply_conv(u, p["up2_c1"], act="relu")
    return apply_conv(u, p["up2_c2"], act="none", out_dtype=jnp.float32)


def gen_dx_bx(xbound, ybound, zbound):
    dx = np.array([r[2] for r in (xbound, ybound, zbound)], np.float32)
    bx = np.array([r[0] + r[2] / 2.0 for r in (xbound, ybound, zbound)], np.float32)
    nx = np.array([(r[1] - r[0]) / r[2] for r in (xbound, ybound, zbound)]).astype(np.int64)
    return dx, bx, nx


# ----------------------------------------------------------------------------
# LiftSplatShoot (functional)
# ----------------------------------------------------------------------------
class LiftSplatShootPallas:
    def __init__(self, grid_conf, data_aug_conf, outC, key):
        self.grid_conf = grid_conf
        self.data_aug_conf = data_aug_conf
        self.downsample = 16
        self.camC = 64
        dx, bx, nx = gen_dx_bx(grid_conf["xbound"], grid_conf["ybound"], grid_conf["zbound"])
        self.dx = jnp.asarray(dx)
        self.bx = jnp.asarray(bx)
        self.nx = [int(v) for v in nx]

        ogfH, ogfW = data_aug_conf["final_dim"]
        self.fH, self.fW = ogfH // self.downsample, ogfW // self.downsample
        ds = np.arange(*grid_conf["dbound"], dtype=np.float32)
        self.D = len(ds)
        self.P = self.D * self.fH * self.fW
        r0 = -(-self.P // 128)
        self.RT = min(8, r0)                      # row-slab tile for the geometry grid
        self.R = _round_up(r0, self.RT)
        self.Pp = self.R * 128
        xs = np.linspace(0, ogfW - 1, self.fW, dtype=np.float32)
        ys = np.linspace(0, ogfH - 1, self.fH, dtype=np.float32)

        def lanes(a):
            v = np.broadcast_to(a, (self.D, self.fH, self.fW)).reshape(-1).astype(np.float32)
            if self.Pp != self.P:
                v = np.concatenate([v, np.full((self.Pp - self.P,), v[-1], np.float32)])
            return jnp.asarray(v.reshape(self.R, 128))    # lane-dense frustum slabs

        self.f_xs = lanes(xs[None, None, :])
        self.f_ys = lanes(ys[None, :, None])
        self.f_ds = lanes(ds[:, None, None])
        self.f_gx = lanes(np.arange(self.fW, dtype=np.float32)[None, None, :])
        self.f_gy = lanes(np.arange(self.fH, dtype=np.float32)[None, :, None])

        self.outC = outC
        self.params = init_params(key, self.D, self.camC, outC)

    def get_geometry_fisheye(self, rots, trans, K, Dcoef, xi):
        B, N, _ = trans.shape
        BN = B * N
        cam = jnp.concatenate(
            [
                K.reshape(BN, 4),
                Dcoef.reshape(BN, 4),
                xi.reshape(BN, 1),
                rots.reshape(BN, 9),
                trans.reshape(BN, 3),
            ],
            axis=1,
        ).astype(jnp.float32)
        radius = (min(self.fH, self.fW) - 1) // 2
        geom = pallas_geometry(
            self.f_xs, self.f_ys, self.f_ds, self.f_gx, self.f_gy, cam,
            self.R, self.RT, self.downsample, float(radius ** 2))
        geom = geom.reshape(BN, 3, self.Pp)[:, :, :self.P]
        geom = geom.transpose(0, 2, 1).reshape(B, N, self.D, self.fH, self.fW, 3)
        return geom

    def circle_keep(self, K_flat):
        # circle keep-factor (identical across depth bins); tiny, plain JAX
        u0d = jnp.floor(K_flat[:, 2] / self.downsample)
        v0d = jnp.floor(K_flat[:, 3] / self.downsample)
        gx = jnp.arange(self.fW, dtype=jnp.float32)[None, None, :]
        gy = jnp.arange(self.fH, dtype=jnp.float32)[None, :, None]
        radius = (min(self.fH, self.fW) - 1) // 2
        dist2 = (gx - u0d[:, None, None]) ** 2 + (gy - v0d[:, None, None]) ** 2
        keep = (dist2 < float(radius ** 2)).astype(jnp.float32)
        return keep.reshape(-1, self.fH * self.fW, 1)     # (BN, HW, 1)

    def get_cam_feats(self, x, keep):
        B, N, C, imH, imW = x.shape
        x = x.reshape(B * N, C, imH, imW)
        rows, Ho, Wo, Ncp = cam_encode(self.params["cam"], x)     # (BN*HW, 128) bf16
        dnet = rows.reshape(B * N, Ho * Wo, Ncp)
        lifted = pallas_lift(dnet, keep, self.D, self.camC)       # (BN, D, HW, 128) bf16
        return lifted.reshape(B, N, self.D, Ho, Wo, Ncp)          # splat-ready layout

    def voxel_pooling(self, geom, x):
        B, N, D, H, W, Cp = x.shape
        nx0, nx1, nx2 = self.nx
        Nprime = B * N * D * H * W
        xflat = x.reshape(Nprime, Cp)                             # bf16, no transpose
        g = ((geom - (self.bx - self.dx / 2.0)) / self.dx).astype(jnp.int32)  # trunc == .long()
        g = g.reshape(Nprime, 3)
        batch_ix = jnp.repeat(jnp.arange(B, dtype=jnp.int32), Nprime // B)
        kept = ((g[:, 0] >= 0) & (g[:, 0] < nx0) &
                (g[:, 1] >= 0) & (g[:, 1] < nx1) &
                (g[:, 2] >= 0) & (g[:, 2] < nx2))
        vox = batch_ix * (nx2 * nx0 * nx1) + g[:, 2] * (nx0 * nx1) + g[:, 0] * nx1 + g[:, 1]
        vox = jnp.where(kept, vox, -1)
        V = B * nx2 * nx0 * nx1
        pooled = pallas_splat(vox, xflat, V)                      # (V, 128) scatter-add
        final = pooled.reshape(B, nx2, nx0, nx1, Cp).transpose(0, 1, 4, 2, 3)
        final = final[:, :, :self.camC]                           # drop channel padding
        return final.reshape(B, nx2 * self.camC, nx0, nx1)        # cat(unbind(dim=2), 1)

    def forward(self, x, rots, trans, intrins, post_rots, post_trans):
        geom = self.get_geometry_fisheye(rots, trans, intrins, post_rots, post_trans)
        keep = self.circle_keep(intrins.reshape(-1, 4))
        feats = self.get_cam_feats(x, keep)                       # circle mask fused in lift
        bev = self.voxel_pooling(geom, feats)
        return bev_encode(self.params["bev"], bev)


# ----------------------------------------------------------------------------
if __name__ == "__main__":
    grid_conf = {
        "xbound": [-8.0, 8.0, 1.0],
        "ybound": [-8.0, 8.0, 1.0],
        "zbound": [-2.0, 2.0, 4.0],
        "dbound": [4.0, 8.0, 1.0],
    }
    data_aug_conf = {"final_dim": (128, 128)}
    outC = 1

    key = jax.random.PRNGKey(0)
    kparam, kx = jax.random.split(key)
    model = LiftSplatShootPallas(grid_conf, data_aug_conf, outC, kparam)

    B, N = 1, 2
    imH, imW = data_aug_conf["final_dim"]
    x = 0.5 * jax.random.normal(kx, (B, N, 3, imH, imW), jnp.float32)

    # camera-to-ego rotations: camera z (forward) -> ego x, plus per-cam yaw
    base = np.array([[0.0, 0.0, 1.0], [-1.0, 0.0, 0.0], [0.0, -1.0, 0.0]], np.float32)
    rots_np = []
    for n in range(N):
        yaw = 0.5 * n
        Rz = np.array(
            [[math.cos(yaw), -math.sin(yaw), 0.0],
             [math.sin(yaw), math.cos(yaw), 0.0],
             [0.0, 0.0, 1.0]], np.float32)
        rots_np.append(Rz @ base)
    rots = jnp.asarray(np.stack(rots_np)[None])                               # (1, 2, 3, 3)
    trans = jnp.asarray(np.array([[[0.5, 0.2, 0.1], [-0.3, 0.4, 0.0]]], np.float32))
    intrins = jnp.asarray(np.array([[[64.0, 64.0, 63.5, 63.5],
                                     [60.0, 60.0, 64.5, 62.5]]], np.float32))  # [g1,g2,u0,v0]
    post_rots = jnp.asarray(np.array([[[-0.05, 0.01, 0.001, -0.001],
                                       [-0.04, 0.008, -0.0005, 0.0008]]], np.float32))  # [k1,k2,p1,p2]
    post_trans = jnp.asarray(np.array([[0.8, 0.9]], np.float32))               # xi

    out = model.forward(x, rots, trans, intrins, post_rots, post_trans)
    jax.block_until_ready(out)
    assert out.shape == (B, outC, model.nx[0], model.nx[1])
    print("KERNEL_OK")
</pallas_src>

<mosaic_0001>
module attributes {stable_mosaic.version = 11 : i64} {
  func.func @_geom_kernel(%arg0: i32, %arg1: i32, %arg2: memref<2x128xf32, #tpu.memory_space<vmem>>, %arg3: memref<2x128xf32, #tpu.memory_space<vmem>>, %arg4: memref<2x128xf32, #tpu.memory_space<vmem>>, %arg5: memref<2x128xf32, #tpu.memory_space<vmem>>, %arg6: memref<2x128xf32, #tpu.memory_space<vmem>>, %arg7: memref<2x21xf32, #tpu.memory_space<smem>>, %arg8: memref<1x3x2x128xf32, #tpu.memory_space<vmem>>) attributes {dimension_semantics = [#tpu.dimension_semantics<parallel>, #tpu.dimension_semantics<parallel>], iteration_bounds = array<i64: 2, 1>, scalar_prefetch = 0 : i64, scratch_operands = 0 : i64, tpu.core_type = #tpu.core_type<tc>, window_params = [{transform_indices = @transform_0, window_bounds = array<i64: 2, 128>}, {transform_indices = @transform_1, window_bounds = array<i64: 2, 128>}, {transform_indices = @transform_2, window_bounds = array<i64: 2, 128>}, {transform_indices = @transform_3, window_bounds = array<i64: 2, 128>}, {transform_indices = @transform_4, window_bounds = array<i64: 2, 128>}, {transform_indices = @transform_5, window_bounds = array<i64: 2, 21>}, {transform_indices = @transform_6, window_bounds = array<i64: 1, 3, 2, 128>}]} {
    %0 = arith.index_cast %arg0 : i32 to index
    %c0 = arith.constant 0 : index
    %1 = memref.load %arg7[%0, %c0] : memref<2x21xf32, #tpu.memory_space<smem>>
    %2 = arith.index_cast %arg0 : i32 to index
    %c1 = arith.constant 1 : index
    %3 = memref.load %arg7[%2, %c1] : memref<2x21xf32, #tpu.memory_space<smem>>
    %4 = arith.index_cast %arg0 : i32 to index
    %c2 = arith.constant 2 : index
    %5 = memref.load %arg7[%4, %c2] : memref<2x21xf32, #tpu.memory_space<smem>>
    %6 = arith.index_cast %arg0 : i32 to index
    %c3 = arith.constant 3 : index
    %7 = memref.load %arg7[%6, %c3] : memref<2x21xf32, #tpu.memory_space<smem>>
    %8 = arith.index_cast %arg0 : i32 to index
    %c4 = arith.constant 4 : index
    %9 = memref.load %arg7[%8, %c4] : memref<2x21xf32, #tpu.memory_space<smem>>
    %10 = arith.index_cast %arg0 : i32 to index
    %c5 = arith.constant 5 : index
    %11 = memref.load %arg7[%10, %c5] : memref<2x21xf32, #tpu.memory_space<smem>>
    %12 = arith.index_cast %arg0 : i32 to index
    %c6 = arith.constant 6 : index
    %13 = memref.load %arg7[%12, %c6] : memref<2x21xf32, #tpu.memory_space<smem>>
    %14 = arith.index_cast %arg0 : i32 to index
    %c7 = arith.constant 7 : index
    %15 = memref.load %arg7[%14, %c7] : memref<2x21xf32, #tpu.memory_space<smem>>
    %16 = arith.index_cast %arg0 : i32 to index
    %c8 = arith.constant 8 : index
    %17 = memref.load %arg7[%16, %c8] : memref<2x21xf32, #tpu.memory_space<smem>>
    %18 = arith.index_cast %arg0 : i32 to index
    %c9 = arith.constant 9 : index
    %19 = memref.load %arg7[%18, %c9] : memref<2x21xf32, #tpu.memory_space<smem>>
    %20 = arith.index_cast %arg0 : i32 to index
    %c10 = arith.constant 10 : index
    %21 = memref.load %arg7[%20, %c10] : memref<2x21xf32, #tpu.memory_space<smem>>
    %22 = arith.index_cast %arg0 : i32 to index
    %c11 = arith.constant 11 : index
    %23 = memref.load %arg7[%22, %c11] : memref<2x21xf32, #tpu.memory_space<smem>>
    %24 = arith.index_cast %arg0 : i32 to index
    %c12 = arith.constant 12 : index
    %25 = memref.load %arg7[%24, %c12] : memref<2x21xf32, #tpu.memory_space<smem>>
    %26 = arith.index_cast %arg0 : i32 to index
    %c13 = arith.constant 13 : index
    %27 = memref.load %arg7[%26, %c13] : memref<2x21xf32, #tpu.memory_space<smem>>
    %28 = arith.index_cast %arg0 : i32 to index
    %c14 = arith.constant 14 : index
    %29 = memref.load %arg7[%28, %c14] : memref<2x21xf32, #tpu.memory_space<smem>>
    %30 = arith.index_cast %arg0 : i32 to index
    %c15 = arith.constant 15 : index
    %31 = memref.load %arg7[%30, %c15] : memref<2x21xf32, #tpu.memory_space<smem>>
    %32 = arith.index_cast %arg0 : i32 to index
    %c16 = arith.constant 16 : index
    %33 = memref.load %arg7[%32, %c16] : memref<2x21xf32, #tpu.memory_space<smem>>
    %34 = arith.index_cast %arg0 : i32 to index
    %c17 = arith.constant 17 : index
    %35 = memref.load %arg7[%34, %c17] : memref<2x21xf32, #tpu.memory_space<smem>>
    %36 = arith.index_cast %arg0 : i32 to index
    %c18 = arith.constant 18 : index
    %37 = memref.load %arg7[%36, %c18] : memref<2x21xf32, #tpu.memory_space<smem>>
    %38 = arith.index_cast %arg0 : i32 to index
    %c19 = arith.constant 19 : index
    %39 = memref.load %arg7[%38, %c19] : memref<2x21xf32, #tpu.memory_space<smem>>
    %40 = arith.index_cast %arg0 : i32 to index
    %c20 = arith.constant 20 : index
    %41 = memref.load %arg7[%40, %c20] : memref<2x21xf32, #tpu.memory_space<smem>>
    %c0_0 = arith.constant 0 : index
    %c0_1 = arith.constant 0 : index
    %42 = vector.load %arg2[%c0_0, %c0_1] : memref<2x128xf32, #tpu.memory_space<vmem>>, vector<2x128xf32>
    %c0_2 = arith.constant 0 : index
    %c0_3 = arith.constant 0 : index
    %43 = vector.load %arg3[%c0_2, %c0_3] : memref<2x128xf32, #tpu.memory_space<vmem>>, vector<2x128xf32>
    %c0_4 = arith.constant 0 : index
    %c0_5 = arith.constant 0 : index
    %44 = vector.load %arg4[%c0_4, %c0_5] : memref<2x128xf32, #tpu.memory_space<vmem>>, vector<2x128xf32>
    %45 = vector.broadcast %5 : f32 to vector<2x128xf32>
    %46 = arith.subf %42, %45 : vector<2x128xf32>
    %47 = vector.broadcast %1 : f32 to vector<2x128xf32>
    %48 = arith.divf %46, %47 : vector<2x128xf32>
    %49 = vector.broadcast %7 : f32 to vector<2x128xf32>
    %50 = arith.subf %43, %49 : vector<2x128xf32>
    %51 = vector.broadcast %3 : f32 to vector<2x128xf32>
    %52 = arith.divf %50, %51 : vector<2x128xf32>
    %53 = arith.mulf %48, %48 : vector<2x128xf32>
    %54 = arith.mulf %52, %52 : vector<2x128xf32>
    %55 = arith.addf %53, %54 : vector<2x128xf32>
    %56 = arith.mulf %55, %55 : vector<2x128xf32>
    %57 = vector.broadcast %9 : f32 to vector<2x128xf32>
    %58 = arith.mulf %57, %55 : vector<2x128xf32>
    %cst = arith.constant 1.000000e+00 : f32
    %59 = vector.broadcast %cst : f32 to vector<2x128xf32>
    %60 = arith.addf %59, %58 : vector<2x128xf32>
    %61 = vector.broadcast %11 : f32 to vector<2x128xf32>
    %62 = arith.mulf %61, %56 : vector<2x128xf32>
    %63 = arith.addf %60, %62 : vector<2x128xf32>
    %cst_6 = arith.constant 1.000000e+00 : f32
    %64 = vector.broadcast %cst_6 : f32 to vector<2x128xf32>
    %65 = arith.divf %64, %63 : vector<2x128xf32>
    %cst_7 = arith.constant 2.000000e+00 : f32
    %66 = arith.mulf %cst_7, %13 : f32
    %67 = vector.broadcast %66 : f32 to vector<2x128xf32>
    %68 = arith.mulf %67, %48 : vector<2x128xf32>
    %69 = arith.mulf %68, %52 : vector<2x128xf32>
    %70 = arith.subf %48, %69 : vector<2x128xf32>
    %cst_8 = arith.constant 2.000000e+00 : f32
    %71 = vector.broadcast %cst_8 : f32 to vector<2x128xf32>
    %72 = arith.mulf %71, %48 : vector<2x128xf32>
    %73 = arith.mulf %72, %48 : vector<2x128xf32>
    %74 = arith.addf %55, %73 : vector<2x128xf32>
    %75 = vector.broadcast %15 : f32 to vector<2x128xf32>
    %76 = arith.mulf %75, %74 : vector<2x128xf32>
    %77 = arith.subf %70, %76 : vector<2x128xf32>
    %78 = arith.mulf %77, %65 : vector<2x128xf32>
    %cst_9 = arith.constant 2.000000e+00 : f32
    %79 = arith.mulf %cst_9, %15 : f32
    %80 = vector.broadcast %79 : f32 to vector<2x128xf32>
    %81 = arith.mulf %80, %48 : vector<2x128xf32>
    %82 = arith.mulf %81, %52 : vector<2x128xf32>
    %83 = arith.subf %52, %82 : vector<2x128xf32>
    %cst_10 = arith.constant 2.000000e+00 : f32
    %84 = vector.broadcast %cst_10 : f32 to vector<2x128xf32>
    %85 = arith.mulf %84, %52 : vector<2x128xf32>
    %86 = arith.mulf %85, %52 : vector<2x128xf32>
    %87 = arith.addf %55, %86 : vector<2x128xf32>
    %88 = vector.broadcast %13 : f32 to vector<2x128xf32>
    %89 = arith.mulf %88, %87 : vector<2x128xf32>
    %90 = arith.subf %83, %89 : vector<2x128xf32>
    %91 = arith.mulf %90, %65 : vector<2x128xf32>
    %92 = arith.mulf %78, %78 : vector<2x128xf32>
    %93 = arith.mulf %91, %91 : vector<2x128xf32>
    %94 = arith.addf %92, %93 : vector<2x128xf32>
    %95 = arith.mulf %94, %94 : vector<2x128xf32>
    %96 = vector.broadcast %9 : f32 to vector<2x128xf32>
    %97 = arith.mulf %96, %94 : vector<2x128xf32>
    %cst_11 = arith.constant 1.000000e+00 : f32
    %98 = vector.broadcast %cst_11 : f32 to vector<2x128xf32>
    %99 = arith.addf %98, %97 : vector<2x128xf32>
    %100 = vector.broadcast %11 : f32 to vector<2x128xf32>
    %101 = arith.mulf %100, %95 : vector<2x128xf32>
    %102 = arith.addf %99, %101 : vector<2x128xf32>
    %cst_12 = arith.constant 1.000000e+00 : f32
    %103 = vector.broadcast %cst_12 : f32 to vector<2x128xf32>
    %104 = arith.divf %103, %102 : vector<2x128xf32>
    %cst_13 = arith.constant 2.000000e+00 : f32
    %105 = arith.mulf %cst_13, %13 : f32
    %106 = vector.broadcast %105 : f32 to vector<2x128xf32>
    %107 = arith.mulf %106, %78 : vector<2x128xf32>
    %108 = arith.mulf %107, %91 : vector<2x128xf32>
    %109 = arith.subf %48, %108 : vector<2x128xf32>
    %cst_14 = arith.constant 2.000000e+00 : f32
    %110 = vector.broadcast %cst_14 : f32 to vector<2x128xf32>
    %111 = arith.mulf %110, %78 : vector<2x128xf32>
    %112 = arith.mulf %111, %78 : vector<2x128xf32>
    %113 = arith.addf %94, %112 : vector<2x128xf32>
    %114 = vector.broadcast %15 : f32 to vector<2x128xf32>
    %115 = arith.mulf %114, %113 : vector<2x128xf32>
    %116 = arith.subf %109, %115 : vector<2x128xf32>
    %117 = arith.mulf %116, %104 : vector<2x128xf32>
    %cst_15 = arith.constant 2.000000e+00 : f32
    %118 = arith.mulf %cst_15, %15 : f32
    %119 = vector.broadcast %118 : f32 to vector<2x128xf32>
    %120 = arith.mulf %119, %78 : vector<2x128xf32>
    %121 = arith.mulf %120, %91 : vector<2x128xf32>
    %122 = arith.subf %52, %121 : vector<2x128xf32>
    %cst_16 = arith.constant 2.000000e+00 : f32
    %123 = vector.broadcast %cst_16 : f32 to vector<2x128xf32>
    %124 = arith.mulf %123, %91 : vector<2x128xf32>
    %125 = arith.mulf %124, %91 : vector<2x128xf32>
    %126 = arith.addf %94, %125 : vector<2x128xf32>
    %127 = vector.broadcast %13 : f32 to vector<2x128xf32>
    %128 = arith.mulf %127, %126 : vector<2x128xf32>
    %129 = arith.subf %122, %128 : vector<2x128xf32>
    %130 = arith.mulf %129, %104 : vector<2x128xf32>
    %131 = arith.mulf %117, %117 : vector<2x128xf32>
    %132 = arith.mulf %130, %130 : vector<2x128xf32>
    %133 = arith.addf %131, %132 : vector<2x128xf32>
    %134 = arith.mulf %133, %133 : vector<2x128xf32>
    %135 = vector.broadcast %9 : f32 to vector<2x128xf32>
    %136 = arith.mulf %135, %133 : vector<2x128xf32>
    %cst_17 = arith.constant 1.000000e+00 : f32
    %137 = vector.broadcast %cst_17 : f32 to vector<2x128xf32>
    %138 = arith.addf %137, %136 : vector<2x128xf32>
    %139 = vector.broadcast %11 : f32 to vector<2x128xf32>
    %140 = arith.mulf %139, %134 : vector<2x128xf32>
    %141 = arith.addf %138, %140 : vector<2x128xf32>
    %cst_18 = arith.constant 1.000000e+00 : f32
    %142 = vector.broadcast %cst_18 : f32 to vector<2x128xf32>
    %143 = arith.divf %142, %141 : vector<2x128xf32>
    %cst_19 = arith.constant 2.000000e+00 : f32
    %144 = arith.mulf %cst_19, %13 : f32
    %145 = vector.broadcast %144 : f32 to vector<2x128xf32>
    %146 = arith.mulf %145, %117 : vector<2x128xf32>
    %147 = arith.mulf %146, %130 : vector<2x128xf32>
    %148 = arith.subf %48, %147 : vector<2x128xf32>
    %cst_20 = arith.constant 2.000000e+00 : f32
    %149 = vector.broadcast %cst_20 : f32 to vector<2x128xf32>
    %150 = arith.mulf %149, %117 : vector<2x128xf32>
    %151 = arith.mulf %150, %117 : vector<2x128xf32>
    %152 = arith.addf %133, %151 : vector<2x128xf32>
    %153 = vector.broadcast %15 : f32 to vector<2x128xf32>
    %154 = arith.mulf %153, %152 : vector<2x128xf32>
    %155 = arith.subf %148, %154 : vector<2x128xf32>
    %156 = arith.mulf %155, %143 : vector<2x128xf32>
    %cst_21 = arith.constant 2.000000e+00 : f32
    %157 = arith.mulf %cst_21, %15 : f32
    %158 = vector.broadcast %157 : f32 to vector<2x128xf32>
    %159 = arith.mulf %158, %117 : vector<2x128xf32>
    %160 = arith.mulf %159, %130 : vector<2x128xf32>
    %161 = arith.subf %52, %160 : vector<2x128xf32>
    %cst_22 = arith.constant 2.000000e+00 : f32
    %162 = vector.broadcast %cst_22 : f32 to vector<2x128xf32>
    %163 = arith.mulf %162, %130 : vector<2x128xf32>
    %164 = arith.mulf %163, %130 : vector<2x128xf32>
    %165 = arith.addf %133, %164 : vector<2x128xf32>
    %166 = vector.broadcast %13 : f32 to vector<2x128xf32>
    %167 = arith.mulf %166, %165 : vector<2x128xf32>
    %168 = arith.subf %161, %167 : vector<2x128xf32>
    %169 = arith.mulf %168, %143 : vector<2x128xf32>
    %170 = arith.mulf %156, %156 : vector<2x128xf32>
    %171 = arith.mulf %169, %169 : vector<2x128xf32>
    %172 = arith.addf %170, %171 : vector<2x128xf32>
    %173 = arith.mulf %172, %172 : vector<2x128xf32>
    %174 = vector.broadcast %9 : f32 to vector<2x128xf32>
    %175 = arith.mulf %174, %172 : vector<2x128xf32>
    %cst_23 = arith.constant 1.000000e+00 : f32
    %176 = vector.broadcast %cst_23 : f32 to vector<2x128xf32>
    %177 = arith.addf %176, %175 : vector<2x128xf32>
    %178 = vector.broadcast %11 : f32 to vector<2x128xf32>
    %179 = arith.mulf %178, %173 : vector<2x128xf32>
    %180 = arith.addf %177, %179 : vector<2x128xf32>
    %cst_24 = arith.constant 1.000000e+00 : f32
    %181 = vector.broadcast %cst_24 : f32 to vector<2x128xf32>
    %182 = arith.divf %181, %180 : vector<2x128xf32>
    %cst_25 = arith.constant 2.000000e+00 : f32
    %183 = arith.mulf %cst_25, %13 : f32
    %184 = vector.broadcast %183 : f32 to vector<2x128xf32>
    %185 = arith.mulf %184, %156 : vector<2x128xf32>
    %186 = arith.mulf %185, %169 : vector<2x128xf32>
    %187 = arith.subf %48, %186 : vector<2x128xf32>
    %cst_26 = arith.constant 2.000000e+00 : f32
    %188 = vector.broadcast %cst_26 : f32 to vector<2x128xf32>
    %189 = arith.mulf %188, %156 : vector<2x128xf32>
    %190 = arith.mulf %189, %156 : vector<2x128xf32>
    %191 = arith.addf %172, %190 : vector<2x128xf32>
    %192 = vector.broadcast %15 : f32 to vector<2x128xf32>
    %193 = arith.mulf %192, %191 : vector<2x128xf32>
    %194 = arith.subf %187, %193 : vector<2x128xf32>
    %195 = arith.mulf %194, %182 : vector<2x128xf32>
    %cst_27 = arith.constant 2.000000e+00 : f32
    %196 = arith.mulf %cst_27, %15 : f32
    %197 = vector.broadcast %196 : f32 to vector<2x128xf32>
    %198 = arith.mulf %197, %156 : vector<2x128xf32>
    %199 = arith.mulf %198, %169 : vector<2x128xf32>
    %200 = arith.subf %52, %199 : vector<2x128xf32>
    %cst_28 = arith.constant 2.000000e+00 : f32
    %201 = vector.broadcast %cst_28 : f32 to vector<2x128xf32>
    %202 = arith.mulf %201, %169 : vector<2x128xf32>
    %203 = arith.mulf %202, %169 : vector<2x128xf32>
    %204 = arith.addf %172, %203 : vector<2x128xf32>
    %205 = vector.broadcast %13 : f32 to vector<2x128xf32>
    %206 = arith.mulf %205, %204 : vector<2x128xf32>
    %207 = arith.subf %200, %206 : vector<2x128xf32>
    %208 = arith.mulf %207, %182 : vector<2x128xf32>
    %209 = arith.mulf %195, %195 : vector<2x128xf32>
    %210 = arith.mulf %208, %208 : vector<2x128xf32>
    %211 = arith.addf %209, %210 : vector<2x128xf32>
    %212 = arith.mulf %211, %211 : vector<2x128xf32>
    %213 = vector.broadcast %9 : f32 to vector<2x128xf32>
    %214 = arith.mulf %213, %211 : vector<2x128xf32>
    %cst_29 = arith.constant 1.000000e+00 : f32
    %215 = vector.broadcast %cst_29 : f32 to vector<2x128xf32>
    %216 = arith.addf %215, %214 : vector<2x128xf32>
    %217 = vector.broadcast %11 : f32 to vector<2x128xf32>
    %218 = arith.mulf %217, %212 : vector<2x128xf32>
    %219 = arith.addf %216, %218 : vector<2x128xf32>
    %cst_30 = arith.constant 1.000000e+00 : f32
    %220 = vector.broadcast %cst_30 : f32 to vector<2x128xf32>
    %221 = arith.divf %220, %219 : vector<2x128xf32>
    %cst_31 = arith.constant 2.000000e+00 : f32
    %222 = arith.mulf %cst_31, %13 : f32
    %223 = vector.broadcast %222 : f32 to vector<2x128xf32>
    %224 = arith.mulf %223, %195 : vector<2x128xf32>
    %225 = arith.mulf %224, %208 : vector<2x128xf32>
    %226 = arith.subf %48, %225 : vector<2x128xf32>
    %cst_32 = arith.constant 2.000000e+00 : f32
    %227 = vector.broadcast %cst_32 : f32 to vector<2x128xf32>
    %228 = arith.mulf %227, %195 : vector<2x128xf32>
    %229 = arith.mulf %228, %195 : vector<2x128xf32>
    %230 = arith.addf %211, %229 : vector<2x128xf32>
    %231 = vector.broadcast %15 : f32 to vector<2x128xf32>
    %232 = arith.mulf %231, %230 : vector<2x128xf32>
    %233 = arith.subf %226, %232 : vector<2x128xf32>
    %234 = arith.mulf %233, %221 : vector<2x128xf32>
    %cst_33 = arith.constant 2.000000e+00 : f32
    %235 = arith.mulf %cst_33, %15 : f32
    %236 = vector.broadcast %235 : f32 to vector<2x128xf32>
    %237 = arith.mulf %236, %195 : vector<2x128xf32>
    %238 = arith.mulf %237, %208 : vector<2x128xf32>
    %239 = arith.subf %52, %238 : vector<2x128xf32>
    %cst_34 = arith.constant 2.000000e+00 : f32
    %240 = vector.broadcast %cst_34 : f32 to vector<2x128xf32>
    %241 = arith.mulf %240, %208 : vector<2x128xf32>
    %242 = arith.mulf %241, %208 : vector<2x128xf32>
    %243 = arith.addf %211, %242 : vector<2x128xf32>
    %244 = vector.broadcast %13 : f32 to vector<2x128xf32>
    %245 = arith.mulf %244, %243 : vector<2x128xf32>
    %246 = arith.subf %239, %245 : vector<2x128xf32>
    %247 = arith.mulf %246, %221 : vector<2x128xf32>
    %248 = arith.mulf %234, %234 : vector<2x128xf32>
    %249 = arith.mulf %247, %247 : vector<2x128xf32>
    %250 = arith.addf %248, %249 : vector<2x128xf32>
    %251 = arith.mulf %250, %250 : vector<2x128xf32>
    %252 = vector.broadcast %9 : f32 to vector<2x128xf32>
    %253 = arith.mulf %252, %250 : vector<2x128xf32>
    %cst_35 = arith.constant 1.000000e+00 : f32
    %254 = vector.broadcast %cst_35 : f32 to vector<2x128xf32>
    %255 = arith.addf %254, %253 : vector<2x128xf32>
    %256 = vector.broadcast %11 : f32 to vector<2x128xf32>
    %257 = arith.mulf %256, %251 : vector<2x128xf32>
    %258 = arith.addf %255, %257 : vector<2x128xf32>
    %cst_36 = arith.constant 1.000000e+00 : f32
    %259 = vector.broadcast %cst_36 : f32 to vector<2x128xf32>
    %260 = arith.divf %259, %258 : vector<2x128xf32>
    %cst_37 = arith.constant 2.000000e+00 : f32
    %261 = arith.mulf %cst_37, %13 : f32
    %262 = vector.broadcast %261 : f32 to vector<2x128xf32>
    %263 = arith.mulf %262, %234 : vector<2x128xf32>
    %264 = arith.mulf %263, %247 : vector<2x128xf32>
    %265 = arith.subf %48, %264 : vector<2x128xf32>
    %cst_38 = arith.constant 2.000000e+00 : f32
    %266 = vector.broadcast %cst_38 : f32 to vector<2x128xf32>
    %267 = arith.mulf %266, %234 : vector<2x128xf32>
    %268 = arith.mulf %267, %234 : vector<2x128xf32>
    %269 = arith.addf %250, %268 : vector<2x128xf32>
    %270 = vector.broadcast %15 : f32 to vector<2x128xf32>
    %271 = arith.mulf %270, %269 : vector<2x128xf32>
    %272 = arith.subf %265, %271 : vector<2x128xf32>
    %273 = arith.mulf %272, %260 : vector<2x128xf32>
    %cst_39 = arith.constant 2.000000e+00 : f32
    %274 = arith.mulf %cst_39, %15 : f32
    %275 = vector.broadcast %274 : f32 to vector<2x128xf32>
    %276 = arith.mulf %275, %234 : vector<2x128xf32>
    %277 = arith.mulf %276, %247 : vector<2x128xf32>
    %278 = arith.subf %52, %277 : vector<2x128xf32>
    %cst_40 = arith.constant 2.000000e+00 : f32
    %279 = vector.broadcast %cst_40 : f32 to vector<2x128xf32>
    %280 = arith.mulf %279, %247 : vector<2x128xf32>
    %281 = arith.mulf %280, %247 : vector<2x128xf32>
    %282 = arith.addf %250, %281 : vector<2x128xf32>
    %283 = vector.broadcast %13 : f32 to vector<2x128xf32>
    %284 = arith.mulf %283, %282 : vector<2x128xf32>
    %285 = arith.subf %278, %284 : vector<2x128xf32>
    %286 = arith.mulf %285, %260 : vector<2x128xf32>
    %287 = arith.mulf %273, %273 : vector<2x128xf32>
    %288 = arith.mulf %286, %286 : vector<2x128xf32>
    %289 = arith.addf %287, %288 : vector<2x128xf32>
    %290 = arith.mulf %289, %289 : vector<2x128xf32>
    %291 = vector.broadcast %9 : f32 to vector<2x128xf32>
    %292 = arith.mulf %291, %289 : vector<2x128xf32>
    %cst_41 = arith.constant 1.000000e+00 : f32
    %293 = vector.broadcast %cst_41 : f32 to vector<2x128xf32>
    %294 = arith.addf %293, %292 : vector<2x128xf32>
    %295 = vector.broadcast %11 : f32 to vector<2x128xf32>
    %296 = arith.mulf %295, %290 : vector<2x128xf32>
    %297 = arith.addf %294, %296 : vector<2x128xf32>
    %cst_42 = arith.constant 1.000000e+00 : f32
    %298 = vector.broadcast %cst_42 : f32 to vector<2x128xf32>
    %299 = arith.divf %298, %297 : vector<2x128xf32>
    %cst_43 = arith.constant 2.000000e+00 : f32
    %300 = arith.mulf %cst_43, %13 : f32
    %301 = vector.broadcast %300 : f32 to vector<2x128xf32>
    %302 = arith.mulf %301, %273 : vector<2x128xf32>
    %303 = arith.mulf %302, %286 : vector<2x128xf32>
    %304 = arith.subf %48, %303 : vector<2x128xf32>
    %cst_44 = arith.constant 2.000000e+00 : f32
    %305 = vector.broadcast %cst_44 : f32 to vector<2x128xf32>
    %306 = arith.mulf %305, %273 : vector<2x128xf32>
    %307 = arith.mulf %306, %273 : vector<2x128xf32>
    %308 = arith.addf %289, %307 : vector<2x128xf32>
    %309 = vector.broadcast %15 : f32 to vector<2x128xf32>
    %310 = arith.mulf %309, %308 : vector<2x128xf32>
    %311 = arith.subf %304, %310 : vector<2x128xf32>
    %312 = arith.mulf %311, %299 : vector<2x128xf32>
    %cst_45 = arith.constant 2.000000e+00 : f32
    %313 = arith.mulf %cst_45, %15 : f32
    %314 = vector.broadcast %313 : f32 to vector<2x128xf32>
    %315 = arith.mulf %314, %273 : vector<2x128xf32>
    %316 = arith.mulf %315, %286 : vector<2x128xf32>
    %317 = arith.subf %52, %316 : vector<2x128xf32>
    %cst_46 = arith.constant 2.000000e+00 : f32
    %318 = vector.broadcast %cst_46 : f32 to vector<2x128xf32>
    %319 = arith.mulf %318, %286 : vector<2x128xf32>
    %320 = arith.mulf %319, %286 : vector<2x128xf32>
    %321 = arith.addf %289, %320 : vector<2x128xf32>
    %322 = vector.broadcast %13 : f32 to vector<2x128xf32>
    %323 = arith.mulf %322, %321 : vector<2x128xf32>
    %324 = arith.subf %317, %323 : vector<2x128xf32>
    %325 = arith.mulf %324, %299 : vector<2x128xf32>
    %326 = arith.mulf %312, %312 : vector<2x128xf32>
    %327 = arith.mulf %325, %325 : vector<2x128xf32>
    %328 = arith.addf %326, %327 : vector<2x128xf32>
    %329 = arith.mulf %328, %328 : vector<2x128xf32>
    %330 = vector.broadcast %9 : f32 to vector<2x128xf32>
    %331 = arith.mulf %330, %328 : vector<2x128xf32>
    %cst_47 = arith.constant 1.000000e+00 : f32
    %332 = vector.broadcast %cst_47 : f32 to vector<2x128xf32>
    %333 = arith.addf %332, %331 : vector<2x128xf32>
    %334 = vector.broadcast %11 : f32 to vector<2x128xf32>
    %335 = arith.mulf %334, %329 : vector<2x128xf32>
    %336 = arith.addf %333, %335 : vector<2x128xf32>
    %cst_48 = arith.constant 1.000000e+00 : f32
    %337 = vector.broadcast %cst_48 : f32 to vector<2x128xf32>
    %338 = arith.divf %337, %336 : vector<2x128xf32>
    %cst_49 = arith.constant 2.000000e+00 : f32
    %339 = arith.mulf %cst_49, %13 : f32
    %340 = vector.broadcast %339 : f32 to vector<2x128xf32>
    %341 = arith.mulf %340, %312 : vector<2x128xf32>
    %342 = arith.mulf %341, %325 : vector<2x128xf32>
    %343 = arith.subf %48, %342 : vector<2x128xf32>
    %cst_50 = arith.constant 2.000000e+00 : f32
    %344 = vector.broadcast %cst_50 : f32 to vector<2x128xf32>
    %345 = arith.mulf %344, %312 : vector<2x128xf32>
    %346 = arith.mulf %345, %312 : vector<2x128xf32>
    %347 = arith.addf %328, %346 : vector<2x128xf32>
    %348 = vector.broadcast %15 : f32 to vector<2x128xf32>
    %349 = arith.mulf %348, %347 : vector<2x128xf32>
    %350 = arith.subf %343, %349 : vector<2x128xf32>
    %351 = arith.mulf %350, %338 : vector<2x128xf32>
    %cst_51 = arith.constant 2.000000e+00 : f32
    %352 = arith.mulf %cst_51, %15 : f32
    %353 = vector.broadcast %352 : f32 to vector<2x128xf32>
    %354 = arith.mulf %353, %312 : vector<2x128xf32>
    %355 = arith.mulf %354, %325 : vector<2x128xf32>
    %356 = arith.subf %52, %355 : vector<2x128xf32>
    %cst_52 = arith.constant 2.000000e+00 : f32
    %357 = vector.broadcast %cst_52 : f32 to vector<2x128xf32>
    %358 = arith.mulf %357, %325 : vector<2x128xf32>
    %359 = arith.mulf %358, %325 : vector<2x128xf32>
    %360 = arith.addf %328, %359 : vector<2x128xf32>
    %361 = vector.broadcast %13 : f32 to vector<2x128xf32>
    %362 = arith.mulf %361, %360 : vector<2x128xf32>
    %363 = arith.subf %356, %362 : vector<2x128xf32>
    %364 = arith.mulf %363, %338 : vector<2x128xf32>
    %365 = arith.mulf %351, %351 : vector<2x128xf32>
    %366 = arith.mulf %364, %364 : vector<2x128xf32>
    %367 = arith.addf %365, %366 : vector<2x128xf32>
    %368 = arith.mulf %367, %367 : vector<2x128xf32>
    %369 = vector.broadcast %9 : f32 to vector<2x128xf32>
    %370 = arith.mulf %369, %367 : vector<2x128xf32>
    %cst_53 = arith.constant 1.000000e+00 : f32
    %371 = vector.broadcast %cst_53 : f32 to vector<2x128xf32>
    %372 = arith.addf %371, %370 : vector<2x128xf32>
    %373 = vector.broadcast %11 : f32 to vector<2x128xf32>
    %374 = arith.mulf %373, %368 : vector<2x128xf32>
    %375 = arith.addf %372, %374 : vector<2x128xf32>
    %cst_54 = arith.constant 1.000000e+00 : f32
    %376 = vector.broadcast %cst_54 : f32 to vector<2x128xf32>
    %377 = arith.divf %376, %375 : vector<2x128xf32>
    %cst_55 = arith.constant 2.000000e+00 : f32
    %378 = arith.mulf %cst_55, %13 : f32
    %379 = vector.broadcast %378 : f32 to vector<2x128xf32>
    %380 = arith.mulf %379, %351 : vector<2x128xf32>
    %381 = arith.mulf %380, %364 : vector<2x128xf32>
    %382 = arith.subf %48, %381 : vector<2x128xf32>
    %cst_56 = arith.constant 2.000000e+00 : f32
    %383 = vector.broadcast %cst_56 : f32 to vector<2x128xf32>
    %384 = arith.mulf %383, %351 : vector<2x128xf32>
    %385 = arith.mulf %384, %351 : vector<2x128xf32>
    %386 = arith.addf %367, %385 : vector<2x128xf32>
    %387 = vector.broadcast %15 : f32 to vector<2x128xf32>
    %388 = arith.mulf %387, %386 : vector<2x128xf32>
    %389 = arith.subf %382, %388 : vector<2x128xf32>
    %390 = arith.mulf %389, %377 : vector<2x128xf32>
    %cst_57 = arith.constant 2.000000e+00 : f32
    %391 = arith.mulf %cst_57, %15 : f32
    %392 = vector.broadcast %391 : f32 to vector<2x128xf32>
    %393 = arith.mulf %392, %351 : vector<2x128xf32>
    %394 = arith.mulf %393, %364 : vector<2x128xf32>
    %395 = arith.subf %52, %394 : vector<2x128xf32>
    %cst_58 = arith.constant 2.000000e+00 : f32
    %396 = vector.broadcast %cst_58 : f32 to vector<2x128xf32>
    %397 = arith.mulf %396, %364 : vector<2x128xf32>
    %398 = arith.mulf %397, %364 : vector<2x128xf32>
    %399 = arith.addf %367, %398 : vector<2x128xf32>
    %400 = vector.broadcast %13 : f32 to vector<2x128xf32>
    %401 = arith.mulf %400, %399 : vector<2x128xf32>
    %402 = arith.subf %395, %401 : vector<2x128xf32>
    %403 = arith.mulf %402, %377 : vector<2x128xf32>
    %404 = arith.mulf %390, %390 : vector<2x128xf32>
    %405 = arith.mulf %403, %403 : vector<2x128xf32>
    %406 = arith.addf %404, %405 : vector<2x128xf32>
    %407 = arith.mulf %406, %406 : vector<2x128xf32>
    %408 = vector.broadcast %9 : f32 to vector<2x128xf32>
    %409 = arith.mulf %408, %406 : vector<2x128xf32>
    %cst_59 = arith.constant 1.000000e+00 : f32
    %410 = vector.broadcast %cst_59 : f32 to vector<2x128xf32>
    %411 = arith.addf %410, %409 : vector<2x128xf32>
    %412 = vector.broadcast %11 : f32 to vector<2x128xf32>
    %413 = arith.mulf %412, %407 : vector<2x128xf32>
    %414 = arith.addf %411, %413 : vector<2x128xf32>
    %cst_60 = arith.constant 1.000000e+00 : f32
    %415 = vector.broadcast %cst_60 : f32 to vector<2x128xf32>
    %416 = arith.divf %415, %414 : vector<2x128xf32>
    %cst_61 = arith.constant 2.000000e+00 : f32
    %417 = arith.mulf %cst_61, %13 : f32
    %418 = vector.broadcast %417 : f32 to vector<2x128xf32>
    %419 = arith.mulf %418, %390 : vector<2x128xf32>
    %420 = arith.mulf %419, %403 : vector<2x128xf32>
    %421 = arith.subf %48, %420 : vector<2x128xf32>
    %cst_62 = arith.constant 2.000000e+00 : f32
    %422 = vector.broadcast %cst_62 : f32 to vector<2x128xf32>
    %423 = arith.mulf %422, %390 : vector<2x128xf32>
    %424 = arith.mulf %423, %390 : vector<2x128xf32>
    %425 = arith.addf %406, %424 : vector<2x128xf32>
    %426 = vector.broadcast %15 : f32 to vector<2x128xf32>
    %427 = arith.mulf %426, %425 : vector<2x128xf32>
    %428 = arith.subf %421, %427 : vector<2x128xf32>
    %429 = arith.mulf %428, %416 : vector<2x128xf32>
    %cst_63 = arith.constant 2.000000e+00 : f32
    %430 = arith.mulf %cst_63, %15 : f32
    %431 = vector.broadcast %430 : f32 to vector<2x128xf32>
    %432 = arith.mulf %431, %390 : vector<2x128xf32>
    %433 = arith.mulf %432, %403 : vector<2x128xf32>
    %434 = arith.subf %52, %433 : vector<2x128xf32>
    %cst_64 = arith.constant 2.000000e+00 : f32
    %435 = vector.broadcast %cst_64 : f32 to vector<2x128xf32>
    %436 = arith.mulf %435, %403 : vector<2x128xf32>
    %437 = arith.mulf %436, %403 : vector<2x128xf32>
    %438 = arith.addf %406, %437 : vector<2x128xf32>
    %439 = vector.broadcast %13 : f32 to vector<2x128xf32>
    %440 = arith.mulf %439, %438 : vector<2x128xf32>
    %441 = arith.subf %434, %440 : vector<2x128xf32>
    %442 = arith.mulf %441, %416 : vector<2x128xf32>
    %443 = arith.mulf %429, %429 : vector<2x128xf32>
    %444 = arith.mulf %442, %442 : vector<2x128xf32>
    %445 = arith.addf %443, %444 : vector<2x128xf32>
    %446 = arith.mulf %445, %445 : vector<2x128xf32>
    %447 = vector.broadcast %9 : f32 to vector<2x128xf32>
    %448 = arith.mulf %447, %445 : vector<2x128xf32>
    %cst_65 = arith.constant 1.000000e+00 : f32
    %449 = vector.broadcast %cst_65 : f32 to vector<2x128xf32>
    %450 = arith.addf %449, %448 : vector<2x128xf32>
    %451 = vector.broadcast %11 : f32 to vector<2x128xf32>
    %452 = arith.mulf %451, %446 : vector<2x128xf32>
    %453 = arith.addf %450, %452 : vector<2x128xf32>
    %cst_66 = arith.constant 1.000000e+00 : f32
    %454 = vector.broadcast %cst_66 : f32 to vector<2x128xf32>
    %455 = arith.divf %454, %453 : vector<2x128xf32>
    %cst_67 = arith.constant 2.000000e+00 : f32
    %456 = arith.mulf %cst_67, %13 : f32
    %457 = vector.broadcast %456 : f32 to vector<2x128xf32>
    %458 = arith.mulf %457, %429 : vector<2x128xf32>
    %459 = arith.mulf %458, %442 : vector<2x128xf32>
    %460 = arith.subf %48, %459 : vector<2x128xf32>
    %cst_68 = arith.constant 2.000000e+00 : f32
    %461 = vector.broadcast %cst_68 : f32 to vector<2x128xf32>
    %462 = arith.mulf %461, %429 : vector<2x128xf32>
    %463 = arith.mulf %462, %429 : vector<2x128xf32>
    %464 = arith.addf %445, %463 : vector<2x128xf32>
    %465 = vector.broadcast %15 : f32 to vector<2x128xf32>
    %466 = arith.mulf %465, %464 : vector<2x128xf32>
    %467 = arith.subf %460, %466 : vector<2x128xf32>
    %468 = arith.mulf %467, %455 : vector<2x128xf32>
    %cst_69 = arith.constant 2.000000e+00 : f32
    %469 = arith.mulf %cst_69, %15 : f32
    %470 = vector.broadcast %469 : f32 to vector<2x128xf32>
    %471 = arith.mulf %470, %429 : vector<2x128xf32>
    %472 = arith.mulf %471, %442 : vector<2x128xf32>
    %473 = arith.subf %52, %472 : vector<2x128xf32>
    %cst_70 = arith.constant 2.000000e+00 : f32
    %474 = vector.broadcast %cst_70 : f32 to vector<2x128xf32>
    %475 = arith.mulf %474, %442 : vector<2x128xf32>
    %476 = arith.mulf %475, %442 : vector<2x128xf32>
    %477 = arith.addf %445, %476 : vector<2x128xf32>
    %478 = vector.broadcast %13 : f32 to vector<2x128xf32>
    %479 = arith.mulf %478, %477 : vector<2x128xf32>
    %480 = arith.subf %473, %479 : vector<2x128xf32>
    %481 = arith.mulf %480, %455 : vector<2x128xf32>
    %482 = arith.mulf %468, %468 : vector<2x128xf32>
    %483 = arith.mulf %481, %481 : vector<2x128xf32>
    %484 = arith.addf %482, %483 : vector<2x128xf32>
    %485 = arith.mulf %484, %484 : vector<2x128xf32>
    %486 = vector.broadcast %9 : f32 to vector<2x128xf32>
    %487 = arith.mulf %486, %484 : vector<2x128xf32>
    %cst_71 = arith.constant 1.000000e+00 : f32
    %488 = vector.broadcast %cst_71 : f32 to vector<2x128xf32>
    %489 = arith.addf %488, %487 : vector<2x128xf32>
    %490 = vector.broadcast %11 : f32 to vector<2x128xf32>
    %491 = arith.mulf %490, %485 : vector<2x128xf32>
    %492 = arith.addf %489, %491 : vector<2x128xf32>
    %cst_72 = arith.constant 1.000000e+00 : f32
    %493 = vector.broadcast %cst_72 : f32 to vector<2x128xf32>
    %494 = arith.divf %493, %492 : vector<2x128xf32>
    %cst_73 = arith.constant 2.000000e+00 : f32
    %495 = arith.mulf %cst_73, %13 : f32
    %496 = vector.broadcast %495 : f32 to vector<2x128xf32>
    %497 = arith.mulf %496, %468 : vector<2x128xf32>
    %498 = arith.mulf %497, %481 : vector<2x128xf32>
    %499 = arith.subf %48, %498 : vector<2x128xf32>
    %cst_74 = arith.constant 2.000000e+00 : f32
    %500 = vector.broadcast %cst_74 : f32 to vector<2x128xf32>
    %501 = arith.mulf %500, %468 : vector<2x128xf32>
    %502 = arith.mulf %501, %468 : vector<2x128xf32>
    %503 = arith.addf %484, %502 : vector<2x128xf32>
    %504 = vector.broadcast %15 : f32 to vector<2x128xf32>
    %505 = arith.mulf %504, %503 : vector<2x128xf32>
    %506 = arith.subf %499, %505 : vector<2x128xf32>
    %507 = arith.mulf %506, %494 : vector<2x128xf32>
    %cst_75 = arith.constant 2.000000e+00 : f32
    %508 = arith.mulf %cst_75, %15 : f32
    %509 = vector.broadcast %508 : f32 to vector<2x128xf32>
    %510 = arith.mulf %509, %468 : vector<2x128xf32>
    %511 = arith.mulf %510, %481 : vector<2x128xf32>
    %512 = arith.subf %52, %511 : vector<2x128xf32>
    %cst_76 = arith.constant 2.000000e+00 : f32
    %513 = vector.broadcast %cst_76 : f32 to vector<2x128xf32>
    %514 = arith.mulf %513, %481 : vector<2x128xf32>
    %515 = arith.mulf %514, %481 : vector<2x128xf32>
    %516 = arith.addf %484, %515 : vector<2x128xf32>
    %517 = vector.broadcast %13 : f32 to vector<2x128xf32>
    %518 = arith.mulf %517, %516 : vector<2x128xf32>
    %519 = arith.subf %512, %518 : vector<2x128xf32>
    %520 = arith.mulf %519, %494 : vector<2x128xf32>
    %521 = arith.mulf %507, %507 : vector<2x128xf32>
    %522 = arith.mulf %520, %520 : vector<2x128xf32>
    %523 = arith.addf %521, %522 : vector<2x128xf32>
    %524 = arith.mulf %523, %523 : vector<2x128xf32>
    %525 = vector.broadcast %9 : f32 to vector<2x128xf32>
    %526 = arith.mulf %525, %523 : vector<2x128xf32>
    %cst_77 = arith.constant 1.000000e+00 : f32
    %527 = vector.broadcast %cst_77 : f32 to vector<2x128xf32>
    %528 = arith.addf %527, %526 : vector<2x128xf32>
    %529 = vector.broadcast %11 : f32 to vector<2x128xf32>
    %530 = arith.mulf %529, %524 : vector<2x128xf32>
    %531 = arith.addf %528, %530 : vector<2x128xf32>
    %cst_78 = arith.constant 1.000000e+00 : f32
    %532 = vector.broadcast %cst_78 : f32 to vector<2x128xf32>
    %533 = arith.divf %532, %531 : vector<2x128xf32>
    %cst_79 = arith.constant 2.000000e+00 : f32
    %534 = arith.mulf %cst_79, %13 : f32
    %535 = vector.broadcast %534 : f32 to vector<2x128xf32>
    %536 = arith.mulf %535, %507 : vector<2x128xf32>
    %537 = arith.mulf %536, %520 : vector<2x128xf32>
    %538 = arith.subf %48, %537 : vector<2x128xf32>
    %cst_80 = arith.constant 2.000000e+00 : f32
    %539 = vector.broadcast %cst_80 : f32 to vector<2x128xf32>
    %540 = arith.mulf %539, %507 : vector<2x128xf32>
    %541 = arith.mulf %540, %507 : vector<2x128xf32>
    %542 = arith.addf %523, %541 : vector<2x128xf32>
    %543 = vector.broadcast %15 : f32 to vector<2x128xf32>
    %544 = arith.mulf %543, %542 : vector<2x128xf32>
    %545 = arith.subf %538, %544 : vector<2x128xf32>
    %546 = arith.mulf %545, %533 : vector<2x128xf32>
    %cst_81 = arith.constant 2.000000e+00 : f32
    %547 = arith.mulf %cst_81, %15 : f32
    %548 = vector.broadcast %547 : f32 to vector<2x128xf32>
    %549 = arith.mulf %548, %507 : vector<2x128xf32>
    %550 = arith.mulf %549, %520 : vector<2x128xf32>
    %551 = arith.subf %52, %550 : vector<2x128xf32>
    %cst_82 = arith.constant 2.000000e+00 : f32
    %552 = vector.broadcast %cst_82 : f32 to vector<2x128xf32>
    %553 = arith.mulf %552, %520 : vector<2x128xf32>
    %554 = arith.mulf %553, %520 : vector<2x128xf32>
    %555 = arith.addf %523, %554 : vector<2x128xf32>
    %556 = vector.broadcast %13 : f32 to vector<2x128xf32>
    %557 = arith.mulf %556, %555 : vector<2x128xf32>
    %558 = arith.subf %551, %557 : vector<2x128xf32>
    %559 = arith.mulf %558, %533 : vector<2x128xf32>
    %560 = arith.mulf %546, %546 : vector<2x128xf32>
    %561 = arith.mulf %559, %559 : vector<2x128xf32>
    %562 = arith.addf %560, %561 : vector<2x128xf32>
    %563 = arith.mulf %562, %562 : vector<2x128xf32>
    %564 = vector.broadcast %9 : f32 to vector<2x128xf32>
    %565 = arith.mulf %564, %562 : vector<2x128xf32>
    %cst_83 = arith.constant 1.000000e+00 : f32
    %566 = vector.broadcast %cst_83 : f32 to vector<2x128xf32>
    %567 = arith.addf %566, %565 : vector<2x128xf32>
    %568 = vector.broadcast %11 : f32 to vector<2x128xf32>
    %569 = arith.mulf %568, %563 : vector<2x128xf32>
    %570 = arith.addf %567, %569 : vector<2x128xf32>
    %cst_84 = arith.constant 1.000000e+00 : f32
    %571 = vector.broadcast %cst_84 : f32 to vector<2x128xf32>
    %572 = arith.divf %571, %570 : vector<2x128xf32>
    %cst_85 = arith.constant 2.000000e+00 : f32
    %573 = arith.mulf %cst_85, %13 : f32
    %574 = vector.broadcast %573 : f32 to vector<2x128xf32>
    %575 = arith.mulf %574, %546 : vector<2x128xf32>
    %576 = arith.mulf %575, %559 : vector<2x128xf32>
    %577 = arith.subf %48, %576 : vector<2x128xf32>
    %cst_86 = arith.constant 2.000000e+00 : f32
    %578 = vector.broadcast %cst_86 : f32 to vector<2x128xf32>
    %579 = arith.mulf %578, %546 : vector<2x128xf32>
    %580 = arith.mulf %579, %546 : vector<2x128xf32>
    %581 = arith.addf %562, %580 : vector<2x128xf32>
    %582 = vector.broadcast %15 : f32 to vector<2x128xf32>
    %583 = arith.mulf %582, %581 : vector<2x128xf32>
    %584 = arith.subf %577, %583 : vector<2x128xf32>
    %585 = arith.mulf %584, %572 : vector<2x128xf32>
    %cst_87 = arith.constant 2.000000e+00 : f32
    %586 = arith.mulf %cst_87, %15 : f32
    %587 = vector.broadcast %586 : f32 to vector<2x128xf32>
    %588 = arith.mulf %587, %546 : vector<2x128xf32>
    %589 = arith.mulf %588, %559 : vector<2x128xf32>
    %590 = arith.subf %52, %589 : vector<2x128xf32>
    %cst_88 = arith.constant 2.000000e+00 : f32
    %591 = vector.broadcast %cst_88 : f32 to vector<2x128xf32>
    %592 = arith.mulf %591, %559 : vector<2x128xf32>
    %593 = arith.mulf %592, %559 : vector<2x128xf32>
    %594 = arith.addf %562, %593 : vector<2x128xf32>
    %595 = vector.broadcast %13 : f32 to vector<2x128xf32>
    %596 = arith.mulf %595, %594 : vector<2x128xf32>
    %597 = arith.subf %590, %596 : vector<2x128xf32>
    %598 = arith.mulf %597, %572 : vector<2x128xf32>
    %599 = arith.mulf %585, %585 : vector<2x128xf32>
    %600 = arith.mulf %598, %598 : vector<2x128xf32>
    %601 = arith.addf %599, %600 : vector<2x128xf32>
    %602 = arith.mulf %601, %601 : vector<2x128xf32>
    %603 = vector.broadcast %9 : f32 to vector<2x128xf32>
    %604 = arith.mulf %603, %601 : vector<2x128xf32>
    %cst_89 = arith.constant 1.000000e+00 : f32
    %605 = vector.broadcast %cst_89 : f32 to vector<2x128xf32>
    %606 = arith.addf %605, %604 : vector<2x128xf32>
    %607 = vector.broadcast %11 : f32 to vector<2x128xf32>
    %608 = arith.mulf %607, %602 : vector<2x128xf32>
    %609 = arith.addf %606, %608 : vector<2x128xf32>
    %cst_90 = arith.constant 1.000000e+00 : f32
    %610 = vector.broadcast %cst_90 : f32 to vector<2x128xf32>
    %611 = arith.divf %610, %609 : vector<2x128xf32>
    %cst_91 = arith.constant 2.000000e+00 : f32
    %612 = arith.mulf %cst_91, %13 : f32
    %613 = vector.broadcast %612 : f32 to vector<2x128xf32>
    %614 = arith.mulf %613, %585 : vector<2x128xf32>
    %615 = arith.mulf %614, %598 : vector<2x128xf32>
    %616 = arith.subf %48, %615 : vector<2x128xf32>
    %cst_92 = arith.constant 2.000000e+00 : f32
    %617 = vector.broadcast %cst_92 : f32 to vector<2x128xf32>
    %618 = arith.mulf %617, %585 : vector<2x128xf32>
    %619 = arith.mulf %618, %585 : vector<2x128xf32>
    %620 = arith.addf %601, %619 : vector<2x128xf32>
    %621 = vector.broadcast %15 : f32 to vector<2x128xf32>
    %622 = arith.mulf %621, %620 : vector<2x128xf32>
    %623 = arith.subf %616, %622 : vector<2x128xf32>
    %624 = arith.mulf %623, %611 : vector<2x128xf32>
    %cst_93 = arith.constant 2.000000e+00 : f32
    %625 = arith.mulf %cst_93, %15 : f32
    %626 = vector.broadcast %625 : f32 to vector<2x128xf32>
    %627 = arith.mulf %626, %585 : vector<2x128xf32>
    %628 = arith.mulf %627, %598 : vector<2x128xf32>
    %629 = arith.subf %52, %628 : vector<2x128xf32>
    %cst_94 = arith.constant 2.000000e+00 : f32
    %630 = vector.broadcast %cst_94 : f32 to vector<2x128xf32>
    %631 = arith.mulf %630, %598 : vector<2x128xf32>
    %632 = arith.mulf %631, %598 : vector<2x128xf32>
    %633 = arith.addf %601, %632 : vector<2x128xf32>
    %634 = vector.broadcast %13 : f32 to vector<2x128xf32>
    %635 = arith.mulf %634, %633 : vector<2x128xf32>
    %636 = arith.subf %629, %635 : vector<2x128xf32>
    %637 = arith.mulf %636, %611 : vector<2x128xf32>
    %638 = arith.mulf %624, %624 : vector<2x128xf32>
    %639 = arith.mulf %637, %637 : vector<2x128xf32>
    %640 = arith.addf %638, %639 : vector<2x128xf32>
    %641 = arith.mulf %640, %640 : vector<2x128xf32>
    %642 = vector.broadcast %9 : f32 to vector<2x128xf32>
    %643 = arith.mulf %642, %640 : vector<2x128xf32>
    %cst_95 = arith.constant 1.000000e+00 : f32
    %644 = vector.broadcast %cst_95 : f32 to vector<2x128xf32>
    %645 = arith.addf %644, %643 : vector<2x128xf32>
    %646 = vector.broadcast %11 : f32 to vector<2x128xf32>
    %647 = arith.mulf %646, %641 : vector<2x128xf32>
    %648 = arith.addf %645, %647 : vector<2x128xf32>
    %cst_96 = arith.constant 1.000000e+00 : f32
    %649 = vector.broadcast %cst_96 : f32 to vector<2x128xf32>
    %650 = arith.divf %649, %648 : vector<2x128xf32>
    %cst_97 = arith.constant 2.000000e+00 : f32
    %651 = arith.mulf %cst_97, %13 : f32
    %652 = vector.broadcast %651 : f32 to vector<2x128xf32>
    %653 = arith.mulf %652, %624 : vector<2x128xf32>
    %654 = arith.mulf %653, %637 : vector<2x128xf32>
    %655 = arith.subf %48, %654 : vector<2x128xf32>
    %cst_98 = arith.constant 2.000000e+00 : f32
    %656 = vector.broadcast %cst_98 : f32 to vector<2x128xf32>
    %657 = arith.mulf %656, %624 : vector<2x128xf32>
    %658 = arith.mulf %657, %624 : vector<2x128xf32>
    %659 = arith.addf %640, %658 : vector<2x128xf32>
    %660 = vector.broadcast %15 : f32 to vector<2x128xf32>
    %661 = arith.mulf %660, %659 : vector<2x128xf32>
    %662 = arith.subf %655, %661 : vector<2x128xf32>
    %663 = arith.mulf %662, %650 : vector<2x128xf32>
    %cst_99 = arith.constant 2.000000e+00 : f32
    %664 = arith.mulf %cst_99, %15 : f32
    %665 = vector.broadcast %664 : f32 to vector<2x128xf32>
    %666 = arith.mulf %665, %624 : vector<2x128xf32>
    %667 = arith.mulf %666, %637 : vector<2x128xf32>
    %668 = arith.subf %52, %667 : vector<2x128xf32>
    %cst_100 = arith.constant 2.000000e+00 : f32
    %669 = vector.broadcast %cst_100 : f32 to vector<2x128xf32>
    %670 = arith.mulf %669, %637 : vector<2x128xf32>
    %671 = arith.mulf %670, %637 : vector<2x128xf32>
    %672 = arith.addf %640, %671 : vector<2x128xf32>
    %673 = vector.broadcast %13 : f32 to vector<2x128xf32>
    %674 = arith.mulf %673, %672 : vector<2x128xf32>
    %675 = arith.subf %668, %674 : vector<2x128xf32>
    %676 = arith.mulf %675, %650 : vector<2x128xf32>
    %677 = arith.mulf %663, %663 : vector<2x128xf32>
    %678 = arith.mulf %676, %676 : vector<2x128xf32>
    %679 = arith.addf %677, %678 : vector<2x128xf32>
    %680 = arith.mulf %679, %679 : vector<2x128xf32>
    %681 = vector.broadcast %9 : f32 to vector<2x128xf32>
    %682 = arith.mulf %681, %679 : vector<2x128xf32>
    %cst_101 = arith.constant 1.000000e+00 : f32
    %683 = vector.broadcast %cst_101 : f32 to vector<2x128xf32>
    %684 = arith.addf %683, %682 : vector<2x128xf32>
    %685 = vector.broadcast %11 : f32 to vector<2x128xf32>
    %686 = arith.mulf %685, %680 : vector<2x128xf32>
    %687 = arith.addf %684, %686 : vector<2x128xf32>
    %cst_102 = arith.constant 1.000000e+00 : f32
    %688 = vector.broadcast %cst_102 : f32 to vector<2x128xf32>
    %689 = arith.divf %688, %687 : vector<2x128xf32>
    %cst_103 = arith.constant 2.000000e+00 : f32
    %690 = arith.mulf %cst_103, %13 : f32
    %691 = vector.broadcast %690 : f32 to vector<2x128xf32>
    %692 = arith.mulf %691, %663 : vector<2x128xf32>
    %693 = arith.mulf %692, %676 : vector<2x128xf32>
    %694 = arith.subf %48, %693 : vector<2x128xf32>
    %cst_104 = arith.constant 2.000000e+00 : f32
    %695 = vector.broadcast %cst_104 : f32 to vector<2x128xf32>
    %696 = arith.mulf %695, %663 : vector<2x128xf32>
    %697 = arith.mulf %696, %663 : vector<2x128xf32>
    %698 = arith.addf %679, %697 : vector<2x128xf32>
    %699 = vector.broadcast %15 : f32 to vector<2x128xf32>
    %700 = arith.mulf %699, %698 : vector<2x128xf32>
    %701 = arith.subf %694, %700 : vector<2x128xf32>
    %702 = arith.mulf %701, %689 : vector<2x128xf32>
    %cst_105 = arith.constant 2.000000e+00 : f32
    %703 = arith.mulf %cst_105, %15 : f32
    %704 = vector.broadcast %703 : f32 to vector<2x128xf32>
    %705 = arith.mulf %704, %663 : vector<2x128xf32>
    %706 = arith.mulf %705, %676 : vector<2x128xf32>
    %707 = arith.subf %52, %706 : vector<2x128xf32>
    %cst_106 = arith.constant 2.000000e+00 : f32
    %708 = vector.broadcast %cst_106 : f32 to vector<2x128xf32>
    %709 = arith.mulf %708, %676 : vector<2x128xf32>
    %710 = arith.mulf %709, %676 : vector<2x128xf32>
    %711 = arith.addf %679, %710 : vector<2x128xf32>
    %712 = vector.broadcast %13 : f32 to vector<2x128xf32>
    %713 = arith.mulf %712, %711 : vector<2x128xf32>
    %714 = arith.subf %707, %713 : vector<2x128xf32>
    %715 = arith.mulf %714, %689 : vector<2x128xf32>
    %716 = arith.mulf %702, %702 : vector<2x128xf32>
    %717 = arith.mulf %715, %715 : vector<2x128xf32>
    %718 = arith.addf %716, %717 : vector<2x128xf32>
    %719 = arith.mulf %718, %718 : vector<2x128xf32>
    %720 = vector.broadcast %9 : f32 to vector<2x128xf32>
    %721 = arith.mulf %720, %718 : vector<2x128xf32>
    %cst_107 = arith.constant 1.000000e+00 : f32
    %722 = vector.broadcast %cst_107 : f32 to vector<2x128xf32>
    %723 = arith.addf %722, %721 : vector<2x128xf32>
    %724 = vector.broadcast %11 : f32 to vector<2x128xf32>
    %725 = arith.mulf %724, %719 : vector<2x128xf32>
    %726 = arith.addf %723, %725 : vector<2x128xf32>
    %cst_108 = arith.constant 1.000000e+00 : f32
    %727 = vector.broadcast %cst_108 : f32 to vector<2x128xf32>
    %728 = arith.divf %727, %726 : vector<2x128xf32>
    %cst_109 = arith.constant 2.000000e+00 : f32
    %729 = arith.mulf %cst_109, %13 : f32
    %730 = vector.broadcast %729 : f32 to vector<2x128xf32>
    %731 = arith.mulf %730, %702 : vector<2x128xf32>
    %732 = arith.mulf %731, %715 : vector<2x128xf32>
    %733 = arith.subf %48, %732 : vector<2x128xf32>
    %cst_110 = arith.constant 2.000000e+00 : f32
    %734 = vector.broadcast %cst_110 : f32 to vector<2x128xf32>
    %735 = arith.mulf %734, %702 : vector<2x128xf32>
    %736 = arith.mulf %735, %702 : vector<2x128xf32>
    %737 = arith.addf %718, %736 : vector<2x128xf32>
    %738 = vector.broadcast %15 : f32 to vector<2x128xf32>
    %739 = arith.mulf %738, %737 : vector<2x128xf32>
    %740 = arith.subf %733, %739 : vector<2x128xf32>
    %741 = arith.mulf %740, %728 : vector<2x128xf32>
    %cst_111 = arith.constant 2.000000e+00 : f32
    %742 = arith.mulf %cst_111, %15 : f32
    %743 = vector.broadcast %742 : f32 to vector<2x128xf32>
    %744 = arith.mulf %743, %702 : vector<2x128xf32>
    %745 = arith.mulf %744, %715 : vector<2x128xf32>
    %746 = arith.subf %52, %745 : vector<2x128xf32>
    %cst_112 = arith.constant 2.000000e+00 : f32
    %747 = vector.broadcast %cst_112 : f32 to vector<2x128xf32>
    %748 = arith.mulf %747, %715 : vector<2x128xf32>
    %749 = arith.mulf %748, %715 : vector<2x128xf32>
    %750 = arith.addf %718, %749 : vector<2x128xf32>
    %751 = vector.broadcast %13 : f32 to vector<2x128xf32>
    %752 = arith.mulf %751, %750 : vector<2x128xf32>
    %753 = arith.subf %746, %752 : vector<2x128xf32>
    %754 = arith.mulf %753, %728 : vector<2x128xf32>
    %755 = arith.mulf %741, %741 : vector<2x128xf32>
    %756 = arith.mulf %754, %754 : vector<2x128xf32>
    %757 = arith.addf %755, %756 : vector<2x128xf32>
    %758 = arith.mulf %757, %757 : vector<2x128xf32>
    %759 = vector.broadcast %9 : f32 to vector<2x128xf32>
    %760 = arith.mulf %759, %757 : vector<2x128xf32>
    %cst_113 = arith.constant 1.000000e+00 : f32
    %761 = vector.broadcast %cst_113 : f32 to vector<2x128xf32>
    %762 = arith.addf %761, %760 : vector<2x128xf32>
    %763 = vector.broadcast %11 : f32 to vector<2x128xf32>
    %764 = arith.mulf %763, %758 : vector<2x128xf32>
    %765 = arith.addf %762, %764 : vector<2x128xf32>
    %cst_114 = arith.constant 1.000000e+00 : f32
    %766 = vector.broadcast %cst_114 : f32 to vector<2x128xf32>
    %767 = arith.divf %766, %765 : vector<2x128xf32>
    %cst_115 = arith.constant 2.000000e+00 : f32
    %768 = arith.mulf %cst_115, %13 : f32
    %769 = vector.broadcast %768 : f32 to vector<2x128xf32>
    %770 = arith.mulf %769, %741 : vector<2x128xf32>
    %771 = arith.mulf %770, %754 : vector<2x128xf32>
    %772 = arith.subf %48, %771 : vector<2x128xf32>
    %cst_116 = arith.constant 2.000000e+00 : f32
    %773 = vector.broadcast %cst_116 : f32 to vector<2x128xf32>
    %774 = arith.mulf %773, %741 : vector<2x128xf32>
    %775 = arith.mulf %774, %741 : vector<2x128xf32>
    %776 = arith.addf %757, %775 : vector<2x128xf32>
    %777 = vector.broadcast %15 : f32 to vector<2x128xf32>
    %778 = arith.mulf %777, %776 : vector<2x128xf32>
    %779 = arith.subf %772, %778 : vector<2x128xf32>
    %780 = arith.mulf %779, %767 : vector<2x128xf32>
    %cst_117 = arith.constant 2.000000e+00 : f32
    %781 = arith.mulf %cst_117, %15 : f32
    %782 = vector.broadcast %781 : f32 to vector<2x128xf32>
    %783 = arith.mulf %782, %741 : vector<2x128xf32>
    %784 = arith.mulf %783, %754 : vector<2x128xf32>
    %785 = arith.subf %52, %784 : vector<2x128xf32>
    %cst_118 = arith.constant 2.000000e+00 : f32
    %786 = vector.broadcast %cst_118 : f32 to vector<2x128xf32>
    %787 = arith.mulf %786, %754 : vector<2x128xf32>
    %788 = arith.mulf %787, %754 : vector<2x128xf32>
    %789 = arith.addf %757, %788 : vector<2x128xf32>
    %790 = vector.broadcast %13 : f32 to vector<2x128xf32>
    %791 = arith.mulf %790, %789 : vector<2x128xf32>
    %792 = arith.subf %785, %791 : vector<2x128xf32>
    %793 = arith.mulf %792, %767 : vector<2x128xf32>
    %794 = arith.mulf %780, %780 : vector<2x128xf32>
    %795 = arith.mulf %793, %793 : vector<2x128xf32>
    %796 = arith.addf %794, %795 : vector<2x128xf32>
    %797 = arith.mulf %796, %796 : vector<2x128xf32>
    %798 = vector.broadcast %9 : f32 to vector<2x128xf32>
    %799 = arith.mulf %798, %796 : vector<2x128xf32>
    %cst_119 = arith.constant 1.000000e+00 : f32
    %800 = vector.broadcast %cst_119 : f32 to vector<2x128xf32>
    %801 = arith.addf %800, %799 : vector<2x128xf32>
    %802 = vector.broadcast %11 : f32 to vector<2x128xf32>
    %803 = arith.mulf %802, %797 : vector<2x128xf32>
    %804 = arith.addf %801, %803 : vector<2x128xf32>
    %cst_120 = arith.constant 1.000000e+00 : f32
    %805 = vector.broadcast %cst_120 : f32 to vector<2x128xf32>
    %806 = arith.divf %805, %804 : vector<2x128xf32>
    %cst_121 = arith.constant 2.000000e+00 : f32
    %807 = arith.mulf %cst_121, %13 : f32
    %808 = vector.broadcast %807 : f32 to vector<2x128xf32>
    %809 = arith.mulf %808, %780 : vector<2x128xf32>
    %810 = arith.mulf %809, %793 : vector<2x128xf32>
    %811 = arith.subf %48, %810 : vector<2x128xf32>
    %cst_122 = arith.constant 2.000000e+00 : f32
    %812 = vector.broadcast %cst_122 : f32 to vector<2x128xf32>
    %813 = arith.mulf %812, %780 : vector<2x128xf32>
    %814 = arith.mulf %813, %780 : vector<2x128xf32>
    %815 = arith.addf %796, %814 : vector<2x128xf32>
    %816 = vector.broadcast %15 : f32 to vector<2x128xf32>
    %817 = arith.mulf %816, %815 : vector<2x128xf32>
    %818 = arith.subf %811, %817 : vector<2x128xf32>
    %819 = arith.mulf %818, %806 : vector<2x128xf32>
    %cst_123 = arith.constant 2.000000e+00 : f32
    %820 = arith.mulf %cst_123, %15 : f32
    %821 = vector.broadcast %820 : f32 to vector<2x128xf32>
    %822 = arith.mulf %821, %780 : vector<2x128xf32>
    %823 = arith.mulf %822, %793 : vector<2x128xf32>
    %824 = arith.subf %52, %823 : vector<2x128xf32>
    %cst_124 = arith.constant 2.000000e+00 : f32
    %825 = vector.broadcast %cst_124 : f32 to vector<2x128xf32>
    %826 = arith.mulf %825, %793 : vector<2x128xf32>
    %827 = arith.mulf %826, %793 : vector<2x128xf32>
    %828 = arith.addf %796, %827 : vector<2x128xf32>
    %829 = vector.broadcast %13 : f32 to vector<2x128xf32>
    %830 = arith.mulf %829, %828 : vector<2x128xf32>
    %831 = arith.subf %824, %830 : vector<2x128xf32>
    %832 = arith.mulf %831, %806 : vector<2x128xf32>
    %833 = arith.mulf %819, %819 : vector<2x128xf32>
    %834 = arith.mulf %832, %832 : vector<2x128xf32>
    %835 = arith.addf %833, %834 : vector<2x128xf32>
    %cst_125 = arith.constant 1.000000e+00 : f32
    %836 = vector.broadcast %cst_125 : f32 to vector<2x128xf32>
    %837 = arith.addf %835, %836 : vector<2x128xf32>
    %cst_126 = arith.constant 2.000000e+00 : f32
    %838 = arith.mulf %cst_126, %17 : f32
    %839 = vector.broadcast %838 : f32 to vector<2x128xf32>
    %840 = arith.mulf %839, %835 : vector<2x128xf32>
    %841 = arith.mulf %17, %17 : f32
    %842 = vector.broadcast %841 : f32 to vector<2x128xf32>
    %843 = arith.mulf %842, %835 : vector<2x128xf32>
    %cst_127 = arith.constant 1.000000e+00 : f32
    %844 = vector.broadcast %cst_127 : f32 to vector<2x128xf32>
    %845 = arith.subf %843, %844 : vector<2x128xf32>
    %846 = arith.mulf %840, %840 : vector<2x128xf32>
    %cst_128 = arith.constant 4.000000e+00 : f32
    %847 = vector.broadcast %cst_128 : f32 to vector<2x128xf32>
    %848 = arith.mulf %847, %837 : vector<2x128xf32>
    %849 = arith.mulf %848, %845 : vector<2x128xf32>
    %850 = arith.subf %846, %849 : vector<2x128xf32>
    %cst_129 = arith.constant 0.000000e+00 : f32
    %851 = vector.broadcast %cst_129 : f32 to vector<2x128xf32>
    %852 = arith.maximumf %850, %851 : vector<2x128xf32>
    %853 = math.sqrt %852 : vector<2x128xf32>
    %854 = arith.subf %853, %840 : vector<2x128xf32>
    %cst_130 = arith.constant 5.000000e-01 : f32
    %855 = vector.broadcast %cst_130 : f32 to vector<2x128xf32>
    %856 = arith.divf %855, %837 : vector<2x128xf32>
    %857 = arith.mulf %854, %856 : vector<2x128xf32>
    %858 = vector.broadcast %17 : f32 to vector<2x128xf32>
    %859 = arith.addf %857, %858 : vector<2x128xf32>
    %860 = arith.mulf %819, %859 : vector<2x128xf32>
    %861 = arith.mulf %832, %859 : vector<2x128xf32>
    %862 = arith.mulf %860, %860 : vector<2x128xf32>
    %863 = arith.mulf %861, %861 : vector<2x128xf32>
    %864 = arith.addf %862, %863 : vector<2x128xf32>
    %865 = arith.mulf %857, %857 : vector<2x128xf32>
    %866 = arith.addf %864, %865 : vector<2x128xf32>
    %cst_131 = arith.constant 1.000000e-24 : f32
    %867 = vector.broadcast %cst_131 : f32 to vector<2x128xf32>
    %868 = arith.maximumf %866, %867 : vector<2x128xf32>
    %869 = math.rsqrt %868 : vector<2x128xf32>
    %870 = arith.mulf %44, %869 : vector<2x128xf32>
    %871 = arith.mulf %860, %870 : vector<2x128xf32>
    %872 = arith.mulf %861, %870 : vector<2x128xf32>
    %873 = arith.mulf %857, %870 : vector<2x128xf32>
    %874 = vector.broadcast %19 : f32 to vector<2x128xf32>
    %875 = arith.mulf %874, %871 : vector<2x128xf32>
    %876 = vector.broadcast %21 : f32 to vector<2x128xf32>
    %877 = arith.mulf %876, %872 : vector<2x128xf32>
    %878 = arith.addf %875, %877 : vector<2x128xf32>
    %879 = vector.broadcast %23 : f32 to vector<2x128xf32>
    %880 = arith.mulf %879, %873 : vector<2x128xf32>
    %881 = arith.addf %878, %880 : vector<2x128xf32>
    %882 = vector.broadcast %37 : f32 to vector<2x128xf32>
    %883 = arith.addf %881, %882 : vector<2x128xf32>
    %884 = vector.broadcast %25 : f32 to vector<2x128xf32>
    %885 = arith.mulf %884, %871 : vector<2x128xf32>
    %886 = vector.broadcast %27 : f32 to vector<2x128xf32>
    %887 = arith.mulf %886, %872 : vector<2x128xf32>
    %888 = arith.addf %885, %887 : vector<2x128xf32>
    %889 = vector.broadcast %29 : f32 to vector<2x128xf32>
    %890 = arith.mulf %889, %873 : vector<2x128xf32>
    %891 = arith.addf %888, %890 : vector<2x128xf32>
    %892 = vector.broadcast %39 : f32 to vector<2x128xf32>
    %893 = arith.addf %891, %892 : vector<2x128xf32>
    %894 = vector.broadcast %31 : f32 to vector<2x128xf32>
    %895 = arith.mulf %894, %871 : vector<2x128xf32>
    %896 = vector.broadcast %33 : f32 to vector<2x128xf32>
    %897 = arith.mulf %896, %872 : vector<2x128xf32>
    %898 = arith.addf %895, %897 : vector<2x128xf32>
    %899 = vector.broadcast %35 : f32 to vector<2x128xf32>
    %900 = arith.mulf %899, %873 : vector<2x128xf32>
    %901 = arith.addf %898, %900 : vector<2x128xf32>
    %902 = vector.broadcast %41 : f32 to vector<2x128xf32>
    %903 = arith.addf %901, %902 : vector<2x128xf32>
    %cst_132 = arith.constant 1.600000e+01 : f32
    %904 = arith.divf %5, %cst_132 : f32
    %905 = math.floor %904 : f32
    %cst_133 = arith.constant 1.600000e+01 : f32
    %906 = arith.divf %7, %cst_133 : f32
    %907 = math.floor %906 : f32
    %c0_134 = arith.constant 0 : index
    %c0_135 = arith.constant 0 : index
    %908 = vector.load %arg5[%c0_134, %c0_135] : memref<2x128xf32, #tpu.memory_space<vmem>>, vector<2x128xf32>
    %909 = vector.broadcast %905 : f32 to vector<2x128xf32>
    %910 = arith.subf %908, %909 : vector<2x128xf32>
    %911 = arith.mulf %910, %910 : vector<2x128xf32>
    %c0_136 = arith.constant 0 : index
    %c0_137 = arith.constant 0 : index
    %912 = vector.load %arg6[%c0_136, %c0_137] : memref<2x128xf32, #tpu.memory_space<vmem>>, vector<2x128xf32>
    %913 = vector.broadcast %907 : f32 to vector<2x128xf32>
    %914 = arith.subf %912, %913 : vector<2x128xf32>
    %915 = arith.mulf %914, %914 : vector<2x128xf32>
    %916 = arith.addf %911, %915 : vector<2x128xf32>
    %cst_138 = arith.constant 9.000000e+00 : f32
    %917 = vector.broadcast %cst_138 : f32 to vector<2x128xf32>
    %918 = arith.cmpf oge, %916, %917 : vector<2x128xf32>
    %cst_139 = arith.constant -1.000000e+03 : f32
    %919 = vector.broadcast %cst_139 : f32 to vector<2x128xf32>
    %920 = arith.select %918, %919, %883 : vector<2x128xi1>, vector<2x128xf32>
    %cst_140 = arith.constant -1.000000e+03 : f32
    %921 = vector.broadcast %cst_140 : f32 to vector<2x128xf32>
    %922 = arith.select %918, %921, %893 : vector<2x128xi1>, vector<2x128xf32>
    %cst_141 = arith.constant -1.000000e+03 : f32
    %923 = vector.broadcast %cst_141 : f32 to vector<2x128xf32>
    %924 = arith.select %918, %923, %903 : vector<2x128xi1>, vector<2x128xf32>
    %cst_142 = arith.constant 0.000000e+00 : f32
    %925 = vector.broadcast %cst_142 : f32 to vector<2x128xf32>
    %926 = arith.subf %925, %920 : vector<2x128xf32>
    %c0_143 = arith.constant 0 : index
    %c0_144 = arith.constant 0 : index
    %c0_145 = arith.constant 0 : index
    %c0_146 = arith.constant 0 : index
    %927 = vector.load %arg8[%c0_143, %c0_144, %c0_145, %c0_146] : memref<1x3x2x128xf32, #tpu.memory_space<vmem>>, vector<1x1x2x128xf32>
    %928 = vector.shape_cast %927 : vector<1x1x2x128xf32> to vector<2x128xf32>
    %929 = vector.shape_cast %926 : vector<2x128xf32> to vector<1x1x2x128xf32>
    tpu.vector_store %arg8[%c0_143, %c0_144, %c0_145, %c0_146], %929 {strides = array<i32>} : memref<1x3x2x128xf32, #tpu.memory_space<vmem>>, vector<1x1x2x128xf32>,
    %c0_147 = arith.constant 0 : index
    %c1_148 = arith.constant 1 : index
    %c0_149 = arith.constant 0 : index
    %c0_150 = arith.constant 0 : index
    %930 = vector.load %arg8[%c0_147, %c1_148, %c0_149, %c0_150] : memref<1x3x2x128xf32, #tpu.memory_space<vmem>>, vector<1x1x2x128xf32>
    %931 = vector.shape_cast %930 : vector<1x1x2x128xf32> to vector<2x128xf32>
    %932 = vector.shape_cast %922 : vector<2x128xf32> to vector<1x1x2x128xf32>
    tpu.vector_store %arg8[%c0_147, %c1_148, %c0_149, %c0_150], %932 {strides = array<i32>} : memref<1x3x2x128xf32, #tpu.memory_space<vmem>>, vector<1x1x2x128xf32>,
    %c0_151 = arith.constant 0 : index
    %c2_152 = arith.constant 2 : index
    %c0_153 = arith.constant 0 : index
    %c0_154 = arith.constant 0 : index
    %933 = vector.load %arg8[%c0_151, %c2_152, %c0_153, %c0_154] : memref<1x3x2x128xf32, #tpu.memory_space<vmem>>, vector<1x1x2x128xf32>
    %934 = vector.shape_cast %933 : vector<1x1x2x128xf32> to vector<2x128xf32>
    %935 = vector.shape_cast %924 : vector<2x128xf32> to vector<1x1x2x128xf32>
    tpu.vector_store %arg8[%c0_151, %c2_152, %c0_153, %c0_154], %935 {strides = array<i32>} : memref<1x3x2x128xf32, #tpu.memory_space<vmem>>, vector<1x1x2x128xf32>,
    return
  }
  func.func @transform_0(%arg0: i32, %arg1: i32) -> (i32, i32) {
    %c0_i32 = arith.constant 0 : i32
    %c0_i32_0 = arith.constant 0 : i32
    return %arg1, %c0_i32 : i32, i32
  }
  func.func @transform_1(%arg0: i32, %arg1: i32) -> (i32, i32) {
    %c0_i32 = arith.constant 0 : i32
    %c0_i32_0 = arith.constant 0 : i32
    return %arg1, %c0_i32 : i32, i32
  }
  func.func @transform_2(%arg0: i32, %arg1: i32) -> (i32, i32) {
    %c0_i32 = arith.constant 0 : i32
    %c0_i32_0 = arith.constant 0 : i32
    return %arg1, %c0_i32 : i32, i32
  }
  func.func @transform_3(%arg0: i32, %arg1: i32) -> (i32, i32) {
    %c0_i32 = arith.constant 0 : i32
    %c0_i32_0 = arith.constant 0 : i32
    return %arg1, %c0_i32 : i32, i32
  }
  func.func @transform_4(%arg0: i32, %arg1: i32) -> (i32, i32) {
    %c0_i32 = arith.constant 0 : i32
    %c0_i32_0 = arith.constant 0 : i32
    return %arg1, %c0_i32 : i32, i32
  }
  func.func @transform_5(%arg0: i32, %arg1: i32) -> (i32, i32) {
    %c0_i32 = arith.constant 0 : i32
    %c0_i32_0 = arith.constant 0 : i32
    %c0_i32_1 = arith.constant 0 : i32
    return %c0_i32, %c0_i32_0 : i32, i32
  }
  func.func @transform_6(%arg0: i32, %arg1: i32) -> (i32, i32, i32, i32) {
    %c0_i32 = arith.constant 0 : i32
    %c0_i32_0 = arith.constant 0 : i32
    %c0_i32_1 = arith.constant 0 : i32
    return %arg0, %c0_i32, %arg1, %c0_i32_0 : i32, i32, i32, i32
  }
}

</mosaic_0001>

<llo_original>
// kernel: tpu_custom_call.1
$region0: #{tpu_custom_call.1}
  #allocation0 [shape = 'u32[]', space=smem, size = 0x4, offset = 0x4, fixed_abs, tag = 'smem constant byte address 0x4 - core index']
  #allocation1 [shape = 'u32[144,128]{1,0:T(1,128)}', space=vmem, size = 0x12000, scoped, tag = 'internal scratch']
  %s0 = inlined_call_operand.hbm [shape: f32[2,128], index: 0, kind: input, shape index: {}]
  %s1 = inlined_call_operand.hbm [shape: f32[2,128], index: 1, kind: input, shape index: {}]
  %s2 = inlined_call_operand.vmem [shape: f32[2,128], index: 2, kind: input, shape index: {}]
  %s3 = inlined_call_operand.vmem [shape: f32[2,128], index: 3, kind: input, shape index: {}]
  %s4 = inlined_call_operand.vmem [shape: f32[2,128], index: 4, kind: input, shape index: {}]
  %s5 = inlined_call_operand.vmem [shape: f32[2,21], index: 5, kind: input, shape index: {}]
  %s6 = inlined_call_operand.hbm [shape: f32[2,3,2,128], index: 6, kind: output, shape index: {}]
  %s7 = sld [smem:[#allocation0]]
  $region69: #{tpu_custom_call.1} parent=0
    _
  %s9 = ssub.s32 1, %s7
  %s10 = scalar_select 0, %s9, %s7
  $region1: #{tpu_custom_call.1} parent=0
    #allocation2 [shape = 'u8[1024]{0}', space=vmem, size = 0x400, scoped, tag = 'input window, operand 0, single buffered']
    #allocation3 [shape = 's32[2]{0}', space=sflag, size = 0x8, scoped, tag = 'scoped memory for tpu_custom_call.1']
    #allocation4 [shape = 's32[2]{0}', space=sflag, size = 0x8, scoped, tag = 'scoped memory for tpu_custom_call.1']
    #allocation5 [shape = 's32[2]{0}', space=sflag, size = 0x8, scoped, tag = 'scoped memory for tpu_custom_call.1']
    #allocation6 [shape = 'u8[1024]{0}', space=vmem, size = 0x400, scoped, tag = 'input window, operand 1, single buffered']
    #allocation7 [shape = 's32[1]{0}', space=sflag, size = 0x4, scoped, tag = 'scoped memory for tpu_custom_call.1']
    #allocation8 [shape = 'u8[1024]{0}', space=smem, size = 0x400, scoped, tag = 'input window, operand 5, single buffered']
    #allocation9 [shape = 'u8[6144]{0}', space=vmem, size = 0x1800, scoped, tag = 'output window, operand 0']
    %11 = vsyncpa [#allocation3], 0
    %12 = vsyncpa [#allocation7], 0
    %13 = vsyncpa [#allocation5], 0
    %14 = vsyncpa [#allocation4], 0
    %s15 = scalar_lea.sflag [#allocation4], 1
    %16 = vsyncpa %s15, 0
    loop: start=0, step=1, limit=4
    $region2: #{tpu_custom_call.1} parent=1 // loop_pre_header
      _
    $region3: #{tpu_custom_call.1} parent=1 // loop_header
      %s18 = sphi 0, %s22
      %p19 = scmp.ge.s32.totalorder %s18, 4
      %s25 = sphi 0, %s37
      %s26 = sphi 0, %s33
      %s27 = sphi 0, %s25
      %s28 = sphi 0, %s26
      %s29 = sphi 0, %s27
      %s30 = sphi 0, %s28
      %s40 = sphi 0, %s42
      %s43 = sphi 0, %s40
      %s44 = sphi 0, %s43
      %s60 = sphi 0, %s44
      %s66 = sphi 0, %s68
      %s69 = sphi 0, %s66
      %s70 = sphi 0, %s69
      %s86 = sphi 0, %s70
      %s92 = sphi 0, %s94
      %s95 = sphi 0, %s92
      %s96 = sphi 0, %s95
      %s112 = sphi 0, %s96
      %s118 = sphi 0, %s120
      %s121 = sphi 0, %s118
      %s122 = sphi 0, %s121
      %s138 = sphi 0, %s122
      %s144 = sphi 0, %s146
      %s147 = sphi 0, %s144
      %s148 = sphi 0, %s147
      %s164 = sphi 0, %s148
      %s168 = sphi 0, %s168
      %s170 = sphi 0, %s168
      %s171 = sphi 0, %s170
      %s185 = sphi 0, %s171
      %s193 = sphi 0, %s195
      %s196 = sphi 0, %s193
      %s197 = sphi 0, %s196
      %s213 = sphi 0, %s197
    $region4: #{tpu_custom_call.1} parent=1 // loop_header_branch
      %21 = sbr.rel (%p19) target = $region8
    $region5: #{tpu_custom_call.1} parent=1 // loop_body
      %s23 = ssub.s32 %s18, 1
      %s24 = ssub.s32 %s18, 2
      %s31 = sadd.s32 1, %s26
      %p32 = scmp.ge.s32.totalorder %s31, 1
      %s33 = scalar_select %p32, 0, %s31
      %s34 = sadd.s32 1, %s25
      %s35 = scalar_select %p32, %s34, %s25
      %p36 = scmp.ge.s32.totalorder %s35, 2
      %s37 = scalar_select %p36, 0, %s35
      %s38 = ssub.s32 %s26, %s33
      %p39 = scmp.eq.s32.totalorder %s38, 0
      %s41 = sadd.s32 %s40, 1
      %s42 = scalar_select %p39, %s40, %s41
      %p45 = pneg %p39
      %p46 = scmp.eq.s32.totalorder %s18, 1
      %p47 = por %p45, %p46
      %p48 = scmp.ne.s32.totalorder %s40, %s43
      %p49 = scmp.eq.s32.totalorder %s18, 0
      %p50 = por %p48, %p49
      %p51 = scmp.ne.s32.totalorder %s40, %s43
      %p52 = scmp.eq.s32.totalorder %s23, 1
      %p53 = por %p51, %p52
      %p54 = scmp.ne.s32.totalorder %s43, %s44
      %p55 = scmp.eq.s32.totalorder %s23, 0
      %p56 = por %p54, %p55
      %p57 = scmp.ne.s32.totalorder %s43, %s44
      %p58 = scmp.eq.s32.totalorder %s24, 1
      %p59 = por %p57, %p58
      %p61 = scmp.ne.s32.totalorder %s44, %s60
      %p62 = scmp.eq.s32.totalorder %s24, 0
      %p63 = por %p61, %p62
      %s64 = ssub.s32 %s26, %s33
      %p65 = scmp.eq.s32.totalorder %s64, 0
      %s67 = sadd.s32 %s66, 1
      %s68 = scalar_select %p65, %s66, %s67
      %p71 = pneg %p65
      %p72 = scmp.eq.s32.totalorder %s18, 1
      %p73 = por %p71, %p72
      %p74 = scmp.ne.s32.totalorder %s66, %s69
      %p75 = scmp.eq.s32.totalorder %s18, 0
      %p76 = por %p74, %p75
      %p77 = scmp.ne.s32.totalorder %s66, %s69
      %p78 = scmp.eq.s32.totalorder %s23, 1
      %p79 = por %p77, %p78
      %p80 = scmp.ne.s32.totalorder %s69, %s70
      %p81 = scmp.eq.s32.totalorder %s23, 0
      %p82 = por %p80, %p81
      %p83 = scmp.ne.s32.totalorder %s69, %s70
      %p84 = scmp.eq.s32.totalorder %s24, 1
      %p85 = por %p83, %p84
      %p87 = scmp.ne.s32.totalorder %s70, %s86
      %p88 = scmp.eq.s32.totalorder %s24, 0
      %p89 = por %p87, %p88
      %s90 = ssub.s32 %s26, %s33
      %p91 = scmp.eq.s32.totalorder %s90, 0
      %s93 = sadd.s32 %s92, 1
      %s94 = scalar_select %p91, %s92, %s93
      %p97 = pneg %p91
      %p98 = scmp.eq.s32.totalorder %s18, 1
      %p99 = por %p97, %p98
      %p100 = scmp.ne.s32.totalorder %s92, %s95
      %p101 = scmp.eq.s32.totalorder %s18, 0
      %p102 = por %p100, %p101
      %p103 = scmp.ne.s32.totalorder %s92, %s95
      %p104 = scmp.eq.s32.totalorder %s23, 1
      %p105 = por %p103, %p104
      %p106 = scmp.ne.s32.totalorder %s95, %s96
      %p107 = scmp.eq.s32.totalorder %s23, 0
      %p108 = por %p106, %p107
      %p109 = scmp.ne.s32.totalorder %s95, %s96
      %p110 = scmp.eq.s32.totalorder %s24, 1
      %p111 = por %p109, %p110
      %p113 = scmp.ne.s32.totalorder %s96, %s112
      %p114 = scmp.eq.s32.totalorder %s24, 0
      %p115 = por %p113, %p114
      %s116 = ssub.s32 %s26, %s33
      %p117 = scmp.eq.s32.totalorder %s116, 0
      %s119 = sadd.s32 %s118, 1
      %s120 = scalar_select %p117, %s118, %s119
      %p123 = pneg %p117
      %p124 = scmp.eq.s32.totalorder %s18, 1
      %p125 = por %p123, %p124
      %p126 = scmp.ne.s32.totalorder %s118, %s121
      %p127 = scmp.eq.s32.totalorder %s18, 0
      %p128 = por %p126, %p127
      %p129 = scmp.ne.s32.totalorder %s118, %s121
      %p130 = scmp.eq.s32.totalorder %s23, 1
      %p131 = por %p129, %p130
      %p132 = scmp.ne.s32.totalorder %s121, %s122
      %p133 = scmp.eq.s32.totalorder %s23, 0
      %p134 = por %p132, %p133
      %p135 = scmp.ne.s32.totalorder %s121, %s122
      %p136 = scmp.eq.s32.totalorder %s24, 1
      %p137 = por %p135, %p136
      %p139 = scmp.ne.s32.totalorder %s122, %s138
      %p140 = scmp.eq.s32.totalorder %s24, 0
      %p141 = por %p139, %p140
      %s142 = ssub.s32 %s26, %s33
      %p143 = scmp.eq.s32.totalorder %s142, 0
      %s145 = sadd.s32 %s144, 1
      %s146 = scalar_select %p143, %s144, %s145
      %p149 = pneg %p143
      %p150 = scmp.eq.s32.totalorder %s18, 1
      %p151 = por %p149, %p150
      %p152 = scmp.ne.s32.totalorder %s144, %s147
      %p153 = scmp.eq.s32.totalorder %s18, 0
      %p154 = por %p152, %p153
      %p155 = scmp.ne.s32.totalorder %s144, %s147
      %p156 = scmp.eq.s32.totalorder %s23, 1
      %p157 = por %p155, %p156
      %p158 = scmp.ne.s32.totalorder %s147, %s148
      %p159 = scmp.eq.s32.totalorder %s23, 0
      %p160 = por %p158, %p159
      %p161 = scmp.ne.s32.totalorder %s147, %s148
      %p162 = scmp.eq.s32.totalorder %s24, 1
      %p163 = por %p161, %p162
      %p165 = scmp.ne.s32.totalorder %s148, %s164
      %p166 = scmp.eq.s32.totalorder %s24, 0
      %p167 = por %p165, %p166
      %s169 = sadd.s32 %s168, 1
      %p172 = scmp.eq.s32.totalorder %s18, 1
      %p173 = scmp.ne.s32.totalorder %s168, %s170
      %p174 = scmp.eq.s32.totalorder %s18, 0
      %p175 = por %p173, %p174
      %p176 = scmp.ne.s32.totalorder %s168, %s170
      %p177 = scmp.eq.s32.totalorder %s23, 1
      %p178 = por %p176, %p177
      %p179 = scmp.ne.s32.totalorder %s170, %s171
      %p180 = scmp.eq.s32.totalorder %s23, 0
      %p181 = por %p179, %p180
      %p182 = scmp.ne.s32.totalorder %s170, %s171
      %p183 = scmp.eq.s32.totalorder %s24, 1
      %p184 = por %p182, %p183
      %p186 = scmp.ne.s32.totalorder %s171, %s185
      %p187 = scmp.eq.s32.totalorder %s24, 0
      %p188 = por %p186, %p187
      %s189 = ssub.s32 %s25, %s37
      %s190 = ssub.s32 %s26, %s33
      %s191 = sor.u32 %s189, %s190
      %p192 = scmp.eq.s32.totalorder %s191, 0
      %s194 = sadd.s32 %s193, 1
      %s195 = scalar_select %p192, %s193, %s194
      %p198 = pneg %p192
      %p199 = scmp.eq.s32.totalorder %s18, 1
      %p200 = por %p198, %p199
      %p201 = scmp.ne.s32.totalorder %s193, %s196
      %p202 = scmp.eq.s32.totalorder %s18, 0
      %p203 = por %p201, %p202
      %p204 = scmp.ne.s32.totalorder %s193, %s196
      %p205 = scmp.eq.s32.totalorder %s23, 1
      %p206 = por %p204, %p205
      %p207 = scmp.ne.s32.totalorder %s196, %s197
      %p208 = scmp.eq.s32.totalorder %s23, 0
      %p209 = por %p207, %p208
      %p210 = scmp.ne.s32.totalorder %s196, %s197
      %p211 = scmp.eq.s32.totalorder %s24, 1
      %p212 = por %p210, %p211
      %p214 = scmp.ne.s32.totalorder %s197, %s213
      %p215 = scmp.eq.s32.totalorder %s24, 0
      %p216 = por %p214, %p215
      %p217 = scmp.le.s32.totalorder 1, %s18
      %p218 = scmp.lt.s32.totalorder %s18, 3
      %p219 = pnand %p217, %p218
      %p220 = pneg %p219
      // Predicated region
      $region9: #{tpu_custom_call.1} parent=5 // pred_check
        _
      $region10: #{tpu_custom_call.1} parent=5 // pred_check_branch
        %222 = sbr.rel (%p219) target = $region12
      $region11: #{tpu_custom_call.1} parent=5 // pred_region
        %s223 = ssub.s32 %s18, 1
        // Predicated region
        $region13: #{tpu_custom_call.1} parent=11 // pred_check
          %p224 = pneg %p56
        $region14: #{tpu_custom_call.1} parent=11 // pred_check_branch
          %226 = sbr.rel (%p224) target = $region16
        $region15: #{tpu_custom_call.1} parent=11 // pred_region
          %s228 = ssub.s32 32, 32
          %229 = vsyncadd [#allocation3], %s228
          %s230 = smul.addr %s28, 32
          %s231 = scalar_lea.hbm %s0, %s230
          %s233 = sshll.u32 [#allocation2], 4
          %s234 = int_to_ptr.vmem [resolvable:$true] %s233
          %236 = dma.hbm_to_vmem [thread:$0]  %s231, 32, %s234, [#allocation3]
        $region16: #{tpu_custom_call.1} parent=11 // pred_fallthru
          _
        // Predicated region
        $region17: #{tpu_custom_call.1} parent=11 // pred_check
          %p237 = pneg %p82
        $region18: #{tpu_custom_call.1} parent=11 // pred_check_branch
          %239 = sbr.rel (%p237) target = $region20
        $region19: #{tpu_custom_call.1} parent=11 // pred_region
          %s241 = ssub.s32 32, 32
          %242 = vsyncadd [#allocation7], %s241
          %s243 = smul.addr %s28, 32
          %s244 = scalar_lea.hbm %s1, %s243
          %s246 = sshll.u32 [#allocation6], 4
          %s247 = int_to_ptr.vmem [resolvable:$true] %s246
          %249 = dma.hbm_to_vmem [thread:$0]  %s244, 32, %s247, [#allocation7]
        $region20: #{tpu_custom_call.1} parent=11 // pred_fallthru
          _
        // Predicated region
        $region21: #{tpu_custom_call.1} parent=11 // pred_check
          %p250 = pneg %p108
        $region22: #{tpu_custom_call.1} parent=11 // pred_check_branch
          %252 = sbr.rel (%p250) target = $region24
        $region23: #{tpu_custom_call.1} parent=11 // pred_region
          %p253 = scmp.lt.s32.totalorder %s28, 0
          %s254 = scalar_select %p253, %s28, 0
          %s255 = smul.addr %s254, 2
          %s256 = scalar_lea.vmem %s2, %s255
        $region24: #{tpu_custom_call.1} parent=11 // pred_fallthru
          _
        // Predicated region
        $region25: #{tpu_custom_call.1} parent=11 // pred_check
          %p257 = pneg %p134
        $region26: #{tpu_custom_call.1} parent=11 // pred_check_branch
          %259 = sbr.rel (%p257) target = $region28
        $region27: #{tpu_custom_call.1} parent=11 // pred_region
          %p260 = scmp.lt.s32.totalorder %s28, 0
          %s261 = scalar_select %p260, %s28, 0
          %s262 = smul.addr %s261, 2
          %s263 = scalar_lea.vmem %s3, %s262
        $region28: #{tpu_custom_call.1} parent=11 // pred_fallthru
          _
        // Predicated region
        $region29: #{tpu_custom_call.1} parent=11 // pred_check
          %p264 = pneg %p160
        $region30: #{tpu_custom_call.1} parent=11 // pred_check_branch
          %266 = sbr.rel (%p264) target = $region32
        $region31: #{tpu_custom_call.1} parent=11 // pred_region
          %p267 = scmp.lt.s32.totalorder %s28, 0
          %s268 = scalar_select %p267, %s28, 0
          %s269 = smul.addr %s268, 2
          %s270 = scalar_lea.vmem %s4, %s269
        $region32: #{tpu_custom_call.1} parent=11 // pred_fallthru
          _
        // Predicated region
        $region33: #{tpu_custom_call.1} parent=11 // pred_check
          %p271 = pneg %p181
        $region34: #{tpu_custom_call.1} parent=11 // pred_check_branch
          %273 = sbr.rel (%p271) target = $region36
        $region35: #{tpu_custom_call.1} parent=11 // pred_region
          %s275 = ssub.s32 32, 32
          %276 = vsyncadd [#allocation5], %s275
          %s278 = sshll.u32 %s5, 4
          %s279 = int_to_ptr.vmem [resolvable:$true] %s278
          %281 = dma.vmem_to_smem %s279, 32, [#allocation8], [#allocation5]
        $region36: #{tpu_custom_call.1} parent=11 // pred_fallthru
          _
      $region12: #{tpu_custom_call.1} parent=5 // pred_fallthru
        _
      %p282 = scmp.lt.s32.totalorder %s18, 2
      // Predicated region
      $region37: #{tpu_custom_call.1} parent=5 // pred_check
        %p283 = pneg %p282
      $region38: #{tpu_custom_call.1} parent=5 // pred_check_branch
        %285 = sbr.rel (%p283) target = $region40
      $region39: #{tpu_custom_call.1} parent=5 // pred_region
        _
      $region40: #{tpu_custom_call.1} parent=5 // pred_fallthru
        _
      %p286 = scmp.le.s32.totalorder 1, %s18
      %p287 = scmp.lt.s32.totalorder %s18, 3
      %p288 = pnand %p286, %p287
      %p289 = pneg %p288
      // Predicated region
      $region41: #{tpu_custom_call.1} parent=5 // pred_check
        _
      $region42: #{tpu_custom_call.1} parent=5 // pred_check_branch
        %291 = sbr.rel (%p288) target = $region44
      $region43: #{tpu_custom_call.1} parent=5 // pred_region
        %s292 = ssub.s32 %s18, 1
        // Predicated region
        $region45: #{tpu_custom_call.1} parent=43 // pred_check
          %p293 = pneg %p56
        $region46: #{tpu_custom_call.1} parent=43 // pred_check_branch
          %295 = sbr.rel (%p293) target = $region48
        $region47: #{tpu_custom_call.1} parent=43 // pred_region
          %296 = dma.done [#allocation3], 32
        $region48: #{tpu_custom_call.1} parent=43 // pred_fallthru
          _
        // Predicated region
        $region49: #{tpu_custom_call.1} parent=43 // pred_check
          %p297 = pneg %p82
        $region50: #{tpu_custom_call.1} parent=43 // pred_check_branch
          %299 = sbr.rel (%p297) target = $region52
        $region51: #{tpu_custom_call.1} parent=43 // pred_region
          %300 = dma.done [#allocation7], 32
        $region52: #{tpu_custom_call.1} parent=43 // pred_fallthru
          _
        // Predicated region
        $region53: #{tpu_custom_call.1} parent=43 // pred_check
          %p301 = pneg %p181
        $region54: #{tpu_custom_call.1} parent=43 // pred_check_branch
          %303 = sbr.rel (%p301) target = $region56
        $region55: #{tpu_custom_call.1} parent=43 // pred_region
          %304 = dma.done [#allocation5], 32
        $region56: #{tpu_custom_call.1} parent=43 // pred_fallthru
          _
        %305 = sfence
        %p306 = pneg %p56
        %p307 = pneg %p53
        %p308 = pneg %p82
        %p309 = pneg %p79
        %p310 = scmp.lt.s32.totalorder %s28, 0
        %s311 = scalar_select %p310, %s28, 0
        %s312 = smul.addr %s311, 2
        %s313 = scalar_lea.vmem %s2, %s312
        %p314 = pneg %p108
        %p315 = pneg %p105
        %p316 = scmp.lt.s32.totalorder %s28, 0
        %s317 = scalar_select %p316, %s28, 0
        %s318 = smul.addr %s317, 2
        %s319 = scalar_lea.vmem %s3, %s318
        %p320 = pneg %p134
        %p321 = pneg %p131
        %p322 = scmp.lt.s32.totalorder %s28, 0
        %s323 = scalar_select %p322, %s28, 0
        %s324 = smul.addr %s323, 2
        %s325 = scalar_lea.vmem %s4, %s324
        %p326 = pneg %p160
        %p327 = pneg %p157
        %p328 = pneg %p181
        %p329 = pneg %p178
        %p330 = pneg %p209
        %p331 = pneg %p206
        %s332 = sand.u32 %s196, 1
        %s333 = scalar_lea.sflag [#allocation4], %s332
        %s334 = sand.u32 %s196, 1
        %s335 = smul.addr %s334, 6
        %s336 = scalar_lea.vmem [#allocation9], %s335
        %p337 = scmp.lt.s32.totalorder %s28, 0
        %s338 = scalar_select %p337, %s28, 0
        %s339 = smul.addr %s338, 2
        %s340 = scalar_lea.vmem %s2, %s339
        %p341 = scmp.lt.s32.totalorder %s28, 0
        %s342 = scalar_select %p341, %s28, 0
        %s343 = smul.addr %s342, 2
        %s344 = scalar_lea.vmem %s3, %s343
        %p345 = scmp.lt.s32.totalorder %s28, 0
        %s346 = scalar_select %p345, %s28, 0
        %s347 = smul.addr %s346, 2
        %s348 = scalar_lea.vmem %s4, %s347
        %s349 = smul.u32 %s27, 128
        %s350 = sld [smem:[#allocation8 + %s349]]
        %s351 = sadd.s32 %s349, 1
        %s352 = sld [smem:[#allocation8 + %s351]]
        %s353 = sadd.s32 %s349, 2
        %s354 = sld [smem:[#allocation8 + %s353]]
        %s355 = sadd.s32 %s349, 3
        %s356 = sld [smem:[#allocation8 + %s355]]
        %s357 = sadd.s32 %s349, 4
        %s358 = sld [smem:[#allocation8 + %s357]]
        %s359 = sadd.s32 %s349, 5
        %s360 = sld [smem:[#allocation8 + %s359]]
        %s361 = sadd.s32 %s349, 6
        %s362 = sld [smem:[#allocation8 + %s361]]
        %s363 = sadd.s32 %s349, 7
        %s364 = sld [smem:[#allocation8 + %s363]]
        %s365 = sadd.s32 %s349, 8
        %s366 = sld [smem:[#allocation8 + %s365]]
        %s367 = sadd.s32 %s349, 9
        %s368 = sld [smem:[#allocation8 + %s367]]
        %s369 = sadd.s32 %s349, 10
        %s370 = sld [smem:[#allocation8 + %s369]]
        %s371 = sadd.s32 %s349, 11
        %s372 = sld [smem:[#allocation8 + %s371]]
        %s373 = sadd.s32 %s349, 12
        %s374 = sld [smem:[#allocation8 + %s373]]
        %s375 = sadd.s32 %s349, 13
        %s376 = sld [smem:[#allocation8 + %s375]]
        %s377 = sadd.s32 %s349, 14
        %s378 = sld [smem:[#allocation8 + %s377]]
        %s379 = sadd.s32 %s349, 15
        %s380 = sld [smem:[#allocation8 + %s379]]
        %s381 = sadd.s32 %s349, 16
        %s382 = sld [smem:[#allocation8 + %s381]]
        %s383 = sadd.s32 %s349, 17
        %s384 = sld [smem:[#allocation8 + %s383]]
        %s385 = sadd.s32 %s349, 18
        %s386 = sld [smem:[#allocation8 + %s385]]
        %s387 = sadd.s32 %s349, 19
        %s388 = sld [smem:[#allocation8 + %s387]]
        %s389 = sadd.s32 %s349, 20
        %s390 = sld [smem:[#allocation8 + %s389]]
        %v391 = vld [vmem:[#allocation2] sm:$0x3]
        %v392 = vld [vmem:[#allocation6] sm:$0x3]
        %v393 = vld [vmem:[%s340] sm:$0x3]
        %v394 = vstv %s354
        %v395 = vsub.f32 %v391, %v394
        %v396 = vstv %s350
        %v397 = vrcp.pop %v396
        %v398 = vmul.f32 %v395, %v397
        %v399 = vstv %s356
        %v400 = vsub.f32 %v392, %v399
        %v401 = vstv %s352
        %v402 = vrcp.pop %v401
        %v403 = vmul.f32 %v400, %v402
        %v404 = vmul.f32 %v398, %v398
        %v405 = vmul.f32 %v403, %v403
        %v406 = vadd.f32 %v404, %v405
        %v407 = vmul.f32 %v406, %v406
        %v408 = vstv %s358
        %v409 = vmul.f32 %v408, %v406
        %v410 = vadd.f32 %v409, 1.0
        %v411 = vstv %s360
        %v412 = vmul.f32 %v411, %v407
        %v413 = vadd.f32 %v410, %v412
        %v414 = vrcp.pop %v413
        %v415 = vmul.f32 1.0, %v414
        %s416 = smul.f32 %s362, 2.0
        %v417 = vstv %s416
        %v418 = vmul.f32 %v417, %v398
        %v419 = vmul.f32 %v418, %v403
        %v420 = vsub.f32 %v398, %v419
        %v421 = vmul.f32 %v398, 2.0
        %v422 = vmul.f32 %v421, %v398
        %v423 = vadd.f32 %v406, %v422
        %v424 = vstv %s364
        %v425 = vmul.f32 %v424, %v423
        %v426 = vsub.f32 %v420, %v425
        %v427 = vmul.f32 %v426, %v415
        %s428 = smul.f32 %s364, 2.0
        %v429 = vstv %s428
        %v430 = vmul.f32 %v429, %v398
        %v431 = vmul.f32 %v430, %v403
        %v432 = vsub.f32 %v403, %v431
        %v433 = vmul.f32 %v403, 2.0
        %v434 = vmul.f32 %v433, %v403
        %v435 = vadd.f32 %v406, %v434
        %v436 = vstv %s362
        %v437 = vmul.f32 %v436, %v435
        %v438 = vsub.f32 %v432, %v437
        %v439 = vmul.f32 %v438, %v415
        %v440 = vmul.f32 %v427, %v427
        %v441 = vmul.f32 %v439, %v439
        %v442 = vadd.f32 %v440, %v441
        %v443 = vmul.f32 %v442, %v442
        %v444 = vmul.f32 %v408, %v442
        %v445 = vadd.f32 %v444, 1.0
        %v446 = vmul.f32 %v411, %v443
        %v447 = vadd.f32 %v445, %v446
        %v448 = vrcp.pop %v447
        %v449 = vmul.f32 1.0, %v448
        %v450 = vmul.f32 %v417, %v427
        %v451 = vmul.f32 %v450, %v439
        %v452 = vsub.f32 %v398, %v451
        %v453 = vmul.f32 %v427, 2.0
        %v454 = vmul.f32 %v453, %v427
        %v455 = vadd.f32 %v442, %v454
        %v456 = vmul.f32 %v424, %v455
        %v457 = vsub.f32 %v452, %v456
        %v458 = vmul.f32 %v457, %v449
        %v459 = vmul.f32 %v429, %v427
        %v460 = vmul.f32 %v459, %v439
        %v461 = vsub.f32 %v403, %v460
        %v462 = vmul.f32 %v439, 2.0
        %v463 = vmul.f32 %v462, %v439
        %v464 = vadd.f32 %v442, %v463
        %v465 = vmul.f32 %v436, %v464
        %v466 = vsub.f32 %v461, %v465
        %v467 = vmul.f32 %v466, %v449
        %v468 = vmul.f32 %v458, %v458
        %v469 = vmul.f32 %v467, %v467
        %v470 = vadd.f32 %v468, %v469
        %v471 = vmul.f32 %v470, %v470
        %v472 = vmul.f32 %v408, %v470
        %v473 = vadd.f32 %v472, 1.0
        %v474 = vmul.f32 %v411, %v471
        %v475 = vadd.f32 %v473, %v474
        %v476 = vrcp.pop %v475
        %v477 = vmul.f32 1.0, %v476
        %v478 = vmul.f32 %v417, %v458
        %v479 = vmul.f32 %v478, %v467
        %v480 = vsub.f32 %v398, %v479
        %v481 = vmul.f32 %v458, 2.0
        %v482 = vmul.f32 %v481, %v458
        %v483 = vadd.f32 %v470, %v482
        %v484 = vmul.f32 %v424, %v483
        %v485 = vsub.f32 %v480, %v484
        %v486 = vmul.f32 %v485, %v477
        %v487 = vmul.f32 %v429, %v458
        %v488 = vmul.f32 %v487, %v467
        %v489 = vsub.f32 %v403, %v488
        %v490 = vmul.f32 %v467, 2.0
        %v491 = vmul.f32 %v490, %v467
        %v492 = vadd.f32 %v470, %v491
        %v493 = vmul.f32 %v436, %v492
        %v494 = vsub.f32 %v489, %v493
        %v495 = vmul.f32 %v494, %v477
        %v496 = vmul.f32 %v486, %v486
        %v497 = vmul.f32 %v495, %v495
        %v498 = vadd.f32 %v496, %v497
        %v499 = vmul.f32 %v498, %v498
        %v500 = vmul.f32 %v408, %v498
        %v501 = vadd.f32 %v500, 1.0
        %v502 = vmul.f32 %v411, %v499
        %v503 = vadd.f32 %v501, %v502
        %v504 = vrcp.pop %v503
        %v505 = vmul.f32 1.0, %v504
        %v506 = vmul.f32 %v417, %v486
        %v507 = vmul.f32 %v506, %v495
        %v508 = vsub.f32 %v398, %v507
        %v509 = vmul.f32 %v486, 2.0
        %v510 = vmul.f32 %v509, %v486
        %v511 = vadd.f32 %v498, %v510
        %v512 = vmul.f32 %v424, %v511
        %v513 = vsub.f32 %v508, %v512
        %v514 = vmul.f32 %v513, %v505
        %v515 = vmul.f32 %v429, %v486
        %v516 = vmul.f32 %v515, %v495
        %v517 = vsub.f32 %v403, %v516
        %v518 = vmul.f32 %v495, 2.0
        %v519 = vmul.f32 %v518, %v495
        %v520 = vadd.f32 %v498, %v519
        %v521 = vmul.f32 %v436, %v520
        %v522 = vsub.f32 %v517, %v521
        %v523 = vmul.f32 %v522, %v505
        %v524 = vmul.f32 %v514, %v514
        %v525 = vmul.f32 %v523, %v523
        %v526 = vadd.f32 %v524, %v525
        %v527 = vmul.f32 %v526, %v526
        %v528 = vmul.f32 %v408, %v526
        %v529 = vadd.f32 %v528, 1.0
        %v530 = vmul.f32 %v411, %v527
        %v531 = vadd.f32 %v529, %v530
        %v532 = vrcp.pop %v531
        %v533 = vmul.f32 1.0, %v532
        %v534 = vmul.f32 %v417, %v514
        %v535 = vmul.f32 %v534, %v523
        %v536 = vsub.f32 %v398, %v535
        %v537 = vmul.f32 %v514, 2.0
        %v538 = vmul.f32 %v537, %v514
        %v539 = vadd.f32 %v526, %v538
        %v540 = vmul.f32 %v424, %v539
        %v541 = vsub.f32 %v536, %v540
        %v542 = vmul.f32 %v541, %v533
        %v543 = vmul.f32 %v429, %v514
        %v544 = vmul.f32 %v543, %v523
        %v545 = vsub.f32 %v403, %v544
        %v546 = vmul.f32 %v523, 2.0
        %v547 = vmul.f32 %v546, %v523
        %v548 = vadd.f32 %v526, %v547
        %v549 = vmul.f32 %v436, %v548
        %v550 = vsub.f32 %v545, %v549
        %v551 = vmul.f32 %v550, %v533
        %v552 = vmul.f32 %v542, %v542
        %v553 = vmul.f32 %v551, %v551
        %v554 = vadd.f32 %v552, %v553
        %v555 = vmul.f32 %v554, %v554
        %v556 = vmul.f32 %v408, %v554
        %v557 = vadd.f32 %v556, 1.0
        %v558 = vmul.f32 %v411, %v555
        %v559 = vadd.f32 %v557, %v558
        %v560 = vrcp.pop %v559
        %v561 = vmul.f32 1.0, %v560
        %v562 = vmul.f32 %v417, %v542
        %v563 = vmul.f32 %v562, %v551
        %v564 = vsub.f32 %v398, %v563
        %v565 = vmul.f32 %v542, 2.0
        %v566 = vmul.f32 %v565, %v542
        %v567 = vadd.f32 %v554, %v566
        %v568 = vmul.f32 %v424, %v567
        %v569 = vsub.f32 %v564, %v568
        %v570 = vmul.f32 %v569, %v561
        %v571 = vmul.f32 %v429, %v542
        %v572 = vmul.f32 %v571, %v551
        %v573 = vsub.f32 %v403, %v572
        %v574 = vmul.f32 %v551, 2.0
        %v575 = vmul.f32 %v574, %v551
        %v576 = vadd.f32 %v554, %v575
        %v577 = vmul.f32 %v436, %v576
        %v578 = vsub.f32 %v573, %v577
        %v579 = vmul.f32 %v578, %v561
        %v580 = vmul.f32 %v570, %v570
        %v581 = vmul.f32 %v579, %v579
        %v582 = vadd.f32 %v580, %v581
        %v583 = vmul.f32 %v582, %v582
        %v584 = vmul.f32 %v408, %v582
        %v585 = vadd.f32 %v584, 1.0
        %v586 = vmul.f32 %v411, %v583
        %v587 = vadd.f32 %v585, %v586
        %v588 = vrcp.pop %v587
        %v589 = vmul.f32 1.0, %v588
        %v590 = vmul.f32 %v417, %v570
        %v591 = vmul.f32 %v590, %v579
        %v592 = vsub.f32 %v398, %v591
        %v593 = vmul.f32 %v570, 2.0
        %v594 = vmul.f32 %v593, %v570
        %v595 = vadd.f32 %v582, %v594
        %v596 = vmul.f32 %v424, %v595
        %v597 = vsub.f32 %v592, %v596
        %v598 = vmul.f32 %v597, %v589
        %v599 = vmul.f32 %v429, %v570
        %v600 = vmul.f32 %v599, %v579
        %v601 = vsub.f32 %v403, %v600
        %v602 = vmul.f32 %v579, 2.0
        %v603 = vmul.f32 %v602, %v579
        %v604 = vadd.f32 %v582, %v603
        %v605 = vmul.f32 %v436, %v604
        %v606 = vsub.f32 %v601, %v605
        %v607 = vmul.f32 %v606, %v589
        %v608 = vmul.f32 %v598, %v598
        %v609 = vmul.f32 %v607, %v607
        %v610 = vadd.f32 %v608, %v609
        %v611 = vmul.f32 %v610, %v610
        %v612 = vmul.f32 %v408, %v610
        %v613 = vadd.f32 %v612, 1.0
        %v614 = vmul.f32 %v411, %v611
        %v615 = vadd.f32 %v613, %v614
        %v616 = vrcp.pop %v615
        %v617 = vmul.f32 1.0, %v616
        %v618 = vmul.f32 %v417, %v598
        %v619 = vmul.f32 %v618, %v607
        %v620 = vsub.f32 %v398, %v619
        %v621 = vmul.f32 %v598, 2.0
        %v622 = vmul.f32 %v621, %v598
        %v623 = vadd.f32 %v610, %v622
        %v624 = vmul.f32 %v424, %v623
        %v625 = vsub.f32 %v620, %v624
        %v626 = vmul.f32 %v625, %v617
        %v627 = vmul.f32 %v429, %v598
        %v628 = vmul.f32 %v627, %v607
        %v629 = vsub.f32 %v403, %v628
        %v630 = vmul.f32 %v607, 2.0
        %v631 = vmul.f32 %v630, %v607
        %v632 = vadd.f32 %v610, %v631
        %v633 = vmul.f32 %v436, %v632
        %v634 = vsub.f32 %v629, %v633
        %v635 = vmul.f32 %v634, %v617
        %v636 = vmul.f32 %v626, %v626
        %v637 = vmul.f32 %v635, %v635
        %v638 = vadd.f32 %v636, %v637
        %v639 = vmul.f32 %v638, %v638
        %v640 = vmul.f32 %v408, %v638
        %v641 = vadd.f32 %v640, 1.0
        %v642 = vmul.f32 %v411, %v639
        %v643 = vadd.f32 %v641, %v642
        %v644 = vrcp.pop %v643
        %v645 = vmul.f32 1.0, %v644
        %v646 = vmul.f32 %v417, %v626
        %v647 = vmul.f32 %v646, %v635
        %v648 = vsub.f32 %v398, %v647
        %v649 = vmul.f32 %v626, 2.0
        %v650 = vmul.f32 %v649, %v626
        %v651 = vadd.f32 %v638, %v650
        %v652 = vmul.f32 %v424, %v651
        %v653 = vsub.f32 %v648, %v652
        %v654 = vmul.f32 %v653, %v645
        %v655 = vmul.f32 %v429, %v626
        %v656 = vmul.f32 %v655, %v635
        %v657 = vsub.f32 %v403, %v656
        %v658 = vmul.f32 %v635, 2.0
        %v659 = vmul.f32 %v658, %v635
        %v660 = vadd.f32 %v638, %v659
        %v661 = vmul.f32 %v436, %v660
        %v662 = vsub.f32 %v657, %v661
        %v663 = vmul.f32 %v662, %v645
        %v664 = vmul.f32 %v654, %v654
        %v665 = vmul.f32 %v663, %v663
        %v666 = vadd.f32 %v664, %v665
        %v667 = vmul.f32 %v666, %v666
        %v668 = vmul.f32 %v408, %v666
        %v669 = vadd.f32 %v668, 1.0
        %v670 = vmul.f32 %v411, %v667
        %v671 = vadd.f32 %v669, %v670
        %v672 = vrcp.pop %v671
        %v673 = vmul.f32 1.0, %v672
        %v674 = vmul.f32 %v417, %v654
        %v675 = vmul.f32 %v674, %v663
        %v676 = vsub.f32 %v398, %v675
        %v677 = vmul.f32 %v654, 2.0
        %v678 = vmul.f32 %v677, %v654
        %v679 = vadd.f32 %v666, %v678
        %v680 = vmul.f32 %v424, %v679
        %v681 = vsub.f32 %v676, %v680
        %v682 = vmul.f32 %v681, %v673
        %v683 = vmul.f32 %v429, %v654
        %v684 = vmul.f32 %v683, %v663
        %v685 = vsub.f32 %v403, %v684
        %v686 = vmul.f32 %v663, 2.0
        %v687 = vmul.f32 %v686, %v663
        %v688 = vadd.f32 %v666, %v687
        %v689 = vmul.f32 %v436, %v688
        %v690 = vsub.f32 %v685, %v689
        %v691 = vmul.f32 %v690, %v673
        %v692 = vmul.f32 %v682, %v682
        %v693 = vmul.f32 %v691, %v691
        %v694 = vadd.f32 %v692, %v693
        %v695 = vmul.f32 %v694, %v694
        %v696 = vmul.f32 %v408, %v694
        %v697 = vadd.f32 %v696, 1.0
        %v698 = vmul.f32 %v411, %v695
        %v699 = vadd.f32 %v697, %v698
        %v700 = vrcp.pop %v699
        %v701 = vmul.f32 1.0, %v700
        %v702 = vmul.f32 %v417, %v682
        %v703 = vmul.f32 %v702, %v691
        %v704 = vsub.f32 %v398, %v703
        %v705 = vmul.f32 %v682, 2.0
        %v706 = vmul.f32 %v705, %v682
        %v707 = vadd.f32 %v694, %v706
        %v708 = vmul.f32 %v424, %v707
        %v709 = vsub.f32 %v704, %v708
        %v710 = vmul.f32 %v709, %v701
        %v711 = vmul.f32 %v429, %v682
        %v712 = vmul.f32 %v711, %v691
        %v713 = vsub.f32 %v403, %v712
        %v714 = vmul.f32 %v691, 2.0
        %v715 = vmul.f32 %v714, %v691
        %v716 = vadd.f32 %v694, %v715
        %v717 = vmul.f32 %v436, %v716
        %v718 = vsub.f32 %v713, %v717
        %v719 = vmul.f32 %v718, %v701
        %v720 = vmul.f32 %v710, %v710
        %v721 = vmul.f32 %v719, %v719
        %v722 = vadd.f32 %v720, %v721
        %v723 = vmul.f32 %v722, %v722
        %v724 = vmul.f32 %v408, %v722
        %v725 = vadd.f32 %v724, 1.0
        %v726 = vmul.f32 %v411, %v723
        %v727 = vadd.f32 %v725, %v726
        %v728 = vrcp.pop %v727
        %v729 = vmul.f32 1.0, %v728
        %v730 = vmul.f32 %v417, %v710
        %v731 = vmul.f32 %v730, %v719
        %v732 = vsub.f32 %v398, %v731
        %v733 = vmul.f32 %v710, 2.0
        %v734 = vmul.f32 %v733, %v710
        %v735 = vadd.f32 %v722, %v734
        %v736 = vmul.f32 %v424, %v735
        %v737 = vsub.f32 %v732, %v736
        %v738 = vmul.f32 %v737, %v729
        %v739 = vmul.f32 %v429, %v710
        %v740 = vmul.f32 %v739, %v719
        %v741 = vsub.f32 %v403, %v740
        %v742 = vmul.f32 %v719, 2.0
        %v743 = vmul.f32 %v742, %v719
        %v744 = vadd.f32 %v722, %v743
        %v745 = vmul.f32 %v436, %v744
        %v746 = vsub.f32 %v741, %v745
        %v747 = vmul.f32 %v746, %v729
        %v748 = vmul.f32 %v738, %v738
        %v749 = vmul.f32 %v747, %v747
        %v750 = vadd.f32 %v748, %v749
        %v751 = vmul.f32 %v750, %v750
        %v752 = vmul.f32 %v408, %v750
        %v753 = vadd.f32 %v752, 1.0
        %v754 = vmul.f32 %v411, %v751
        %v755 = vadd.f32 %v753, %v754
        %v756 = vrcp.pop %v755
        %v757 = vmul.f32 1.0, %v756
        %v758 = vmul.f32 %v417, %v738
        %v759 = vmul.f32 %v758, %v747
        %v760 = vsub.f32 %v398, %v759
        %v761 = vmul.f32 %v738, 2.0
        %v762 = vmul.f32 %v761, %v738
        %v763 = vadd.f32 %v750, %v762
        %v764 = vmul.f32 %v424, %v763
        %v765 = vsub.f32 %v760, %v764
        %v766 = vmul.f32 %v765, %v757
        %v767 = vmul.f32 %v429, %v738
        %v768 = vmul.f32 %v767, %v747
        %v769 = vsub.f32 %v403, %v768
        %v770 = vmul.f32 %v747, 2.0
        %v771 = vmul.f32 %v770, %v747
        %v772 = vadd.f32 %v750, %v771
        %v773 = vmul.f32 %v436, %v772
        %v774 = vsub.f32 %v769, %v773
        %v775 = vmul.f32 %v774, %v757
        %v776 = vmul.f32 %v766, %v766
        %v777 = vmul.f32 %v775, %v775
        %v778 = vadd.f32 %v776, %v777
        %v779 = vmul.f32 %v778, %v778
        %v780 = vmul.f32 %v408, %v778
        %v781 = vadd.f32 %v780, 1.0
        %v782 = vmul.f32 %v411, %v779
        %v783 = vadd.f32 %v781, %v782
        %v784 = vrcp.pop %v783
        %v785 = vmul.f32 1.0, %v784
        %v786 = vmul.f32 %v417, %v766
        %v787 = vmul.f32 %v786, %v775
        %v788 = vsub.f32 %v398, %v787
        %v789 = vmul.f32 %v766, 2.0
        %v790 = vmul.f32 %v789, %v766
        %v791 = vadd.f32 %v778, %v790
        %v792 = vmul.f32 %v424, %v791
        %v793 = vsub.f32 %v788, %v792
        %v794 = vmul.f32 %v793, %v785
        %v795 = vmul.f32 %v429, %v766
        %v796 = vmul.f32 %v795, %v775
        %v797 = vsub.f32 %v403, %v796
        %v798 = vmul.f32 %v775, 2.0
        %v799 = vmul.f32 %v798, %v775
        %v800 = vadd.f32 %v778, %v799
        %v801 = vmul.f32 %v436, %v800
        %v802 = vsub.f32 %v797, %v801
        %v803 = vmul.f32 %v802, %v785
        %v804 = vmul.f32 %v794, %v794
        %v805 = vmul.f32 %v803, %v803
        %v806 = vadd.f32 %v804, %v805
        %v807 = vmul.f32 %v806, %v806
        %v808 = vmul.f32 %v408, %v806
        %v809 = vadd.f32 %v808, 1.0
        %v810 = vmul.f32 %v411, %v807
        %v811 = vadd.f32 %v809, %v810
        %v812 = vrcp.pop %v811
        %v813 = vmul.f32 1.0, %v812
        %v814 = vmul.f32 %v417, %v794
        %v815 = vmul.f32 %v814, %v803
        %v816 = vsub.f32 %v398, %v815
        %v817 = vmul.f32 %v794, 2.0
        %v818 = vmul.f32 %v817, %v794
        %v819 = vadd.f32 %v806, %v818
        %v820 = vmul.f32 %v424, %v819
        %v821 = vsub.f32 %v816, %v820
        %v822 = vmul.f32 %v821, %v813
        %v823 = vmul.f32 %v429, %v794
        %v824 = vmul.f32 %v823, %v803
        %v825 = vsub.f32 %v403, %v824
        %v826 = vmul.f32 %v803, 2.0
        %v827 = vmul.f32 %v826, %v803
        %v828 = vadd.f32 %v806, %v827
        %v829 = vmul.f32 %v436, %v828
        %v830 = vsub.f32 %v825, %v829
        %v831 = vmul.f32 %v830, %v813
        %v832 = vmul.f32 %v822, %v822
        %v833 = vmul.f32 %v831, %v831
        %v834 = vadd.f32 %v832, %v833
        %v835 = vmul.f32 %v834, %v834
        %v836 = vmul.f32 %v408, %v834
        %v837 = vadd.f32 %v836, 1.0
        %v838 = vmul.f32 %v411, %v835
        %v839 = vadd.f32 %v837, %v838
        %v840 = vrcp.pop %v839
        %v841 = vmul.f32 1.0, %v840
        %v842 = vmul.f32 %v417, %v822
        %v843 = vmul.f32 %v842, %v831
        %v844 = vsub.f32 %v398, %v843
        %v845 = vmul.f32 %v822, 2.0
        %v846 = vmul.f32 %v845, %v822
        %v847 = vadd.f32 %v834, %v846
        %v848 = vmul.f32 %v424, %v847
        %v849 = vsub.f32 %v844, %v848
        %v850 = vmul.f32 %v849, %v841
        %v851 = vmul.f32 %v429, %v822
        %v852 = vmul.f32 %v851, %v831
        %v853 = vsub.f32 %v403, %v852
        %v854 = vmul.f32 %v831, 2.0
        %v855 = vmul.f32 %v854, %v831
        %v856 = vadd.f32 %v834, %v855
        %v857 = vmul.f32 %v436, %v856
        %v858 = vsub.f32 %v853, %v857
        %v859 = vmul.f32 %v858, %v841
        %v860 = vmul.f32 %v850, %v850
        %v861 = vmul.f32 %v859, %v859
        %v862 = vadd.f32 %v860, %v861
        %v863 = vmul.f32 %v862, %v862
        %v864 = vmul.f32 %v408, %v862
        %v865 = vadd.f32 %v864, 1.0
        %v866 = vmul.f32 %v411, %v863
        %v867 = vadd.f32 %v865, %v866
        %v868 = vrcp.pop %v867
        %v869 = vmul.f32 1.0, %v868
        %v870 = vmul.f32 %v417, %v850
        %v871 = vmul.f32 %v870, %v859
        %v872 = vsub.f32 %v398, %v871
        %v873 = vmul.f32 %v850, 2.0
        %v874 = vmul.f32 %v873, %v850
        %v875 = vadd.f32 %v862, %v874
        %v876 = vmul.f32 %v424, %v875
        %v877 = vsub.f32 %v872, %v876
        %v878 = vmul.f32 %v877, %v869
        %v879 = vmul.f32 %v429, %v850
        %v880 = vmul.f32 %v879, %v859
        %v881 = vsub.f32 %v403, %v880
        %v882 = vmul.f32 %v859, 2.0
        %v883 = vmul.f32 %v882, %v859
        %v884 = vadd.f32 %v862, %v883
        %v885 = vmul.f32 %v436, %v884
        %v886 = vsub.f32 %v881, %v885
        %v887 = vmul.f32 %v886, %v869
        %v888 = vmul.f32 %v878, %v878
        %v889 = vmul.f32 %v887, %v887
        %v890 = vadd.f32 %v888, %v889
        %v891 = vmul.f32 %v890, %v890
        %v892 = vmul.f32 %v408, %v890
        %v893 = vadd.f32 %v892, 1.0
        %v894 = vmul.f32 %v411, %v891
        %v895 = vadd.f32 %v893, %v894
        %v896 = vrcp.pop %v895
        %v897 = vmul.f32 1.0, %v896
        %v898 = vmul.f32 %v417, %v878
        %v899 = vmul.f32 %v898, %v887
        %v900 = vsub.f32 %v398, %v899
        %v901 = vmul.f32 %v878, 2.0
        %v902 = vmul.f32 %v901, %v878
        %v903 = vadd.f32 %v890, %v902
        %v904 = vmul.f32 %v424, %v903
        %v905 = vsub.f32 %v900, %v904
        %v906 = vmul.f32 %v905, %v897
        %v907 = vmul.f32 %v429, %v878
        %v908 = vmul.f32 %v907, %v887
        %v909 = vsub.f32 %v403, %v908
        %v910 = vmul.f32 %v887, 2.0
        %v911 = vmul.f32 %v910, %v887
        %v912 = vadd.f32 %v890, %v911
        %v913 = vmul.f32 %v436, %v912
        %v914 = vsub.f32 %v909, %v913
        %v915 = vmul.f32 %v914, %v897
        %v916 = vmul.f32 %v906, %v906
        %v917 = vmul.f32 %v915, %v915
        %v918 = vadd.f32 %v916, %v917
        %v919 = vmul.f32 %v918, %v918
        %v920 = vmul.f32 %v408, %v918
        %v921 = vadd.f32 %v920, 1.0
        %v922 = vmul.f32 %v411, %v919
        %v923 = vadd.f32 %v921, %v922
        %v924 = vrcp.pop %v923
        %v925 = vmul.f32 1.0, %v924
        %v926 = vmul.f32 %v417, %v906
        %v927 = vmul.f32 %v926, %v915
        %v928 = vsub.f32 %v398, %v927
        %v929 = vmul.f32 %v906, 2.0
        %v930 = vmul.f32 %v929, %v906
        %v931 = vadd.f32 %v918, %v930
        %v932 = vmul.f32 %v424, %v931
        %v933 = vsub.f32 %v928, %v932
        %v934 = vmul.f32 %v933, %v925
        %v935 = vmul.f32 %v429, %v906
        %v936 = vmul.f32 %v935, %v915
        %v937 = vsub.f32 %v403, %v936
        %v938 = vmul.f32 %v915, 2.0
        %v939 = vmul.f32 %v938, %v915
        %v940 = vadd.f32 %v918, %v939
        %v941 = vmul.f32 %v436, %v940
        %v942 = vsub.f32 %v937, %v941
        %v943 = vmul.f32 %v942, %v925
        %v944 = vmul.f32 %v934, %v934
        %v945 = vmul.f32 %v943, %v943
        %v946 = vadd.f32 %v944, %v945
        %v947 = vmul.f32 %v946, %v946
        %v948 = vmul.f32 %v408, %v946
        %v949 = vadd.f32 %v948, 1.0
        %v950 = vmul.f32 %v411, %v947
        %v951 = vadd.f32 %v949, %v950
        %v952 = vrcp.pop %v951
        %v953 = vmul.f32 1.0, %v952
        %v954 = vmul.f32 %v417, %v934
        %v955 = vmul.f32 %v954, %v943
        %v956 = vsub.f32 %v398, %v955
        %v957 = vmul.f32 %v934, 2.0
        %v958 = vmul.f32 %v957, %v934
        %v959 = vadd.f32 %v946, %v958
        %v960 = vmul.f32 %v424, %v959
        %v961 = vsub.f32 %v956, %v960
        %v962 = vmul.f32 %v961, %v953
        %v963 = vmul.f32 %v429, %v934
        %v964 = vmul.f32 %v963, %v943
        %v965 = vsub.f32 %v403, %v964
        %v966 = vmul.f32 %v943, 2.0
        %v967 = vmul.f32 %v966, %v943
        %v968 = vadd.f32 %v946, %v967
        %v969 = vmul.f32 %v436, %v968
        %v970 = vsub.f32 %v965, %v969
        %v971 = vmul.f32 %v970, %v953
        %v972 = vmul.f32 %v962, %v962
        %v973 = vmul.f32 %v971, %v971
        %v974 = vadd.f32 %v972, %v973
        %v975 = vadd.f32 %v974, 1.0
        %s976 = smul.f32 %s366, 2.0
        %v977 = vstv %s976
        %v978 = vmul.f32 %v977, %v974
        %s979 = smul.f32 %s366, %s366
        %v980 = vstv %s979
        %v981 = vmul.f32 %v980, %v974
        %v982 = vsub.f32 %v981, 1.0
        %v983 = vmul.f32 %v978, %v978
        %v984 = vmul.f32 %v975, 4.0
        %v985 = vmul.f32 %v984, %v982
        %v986 = vsub.f32 %v983, %v985
        %v987 = vmax.f32 %v986, 0.0
        %v988 = vrsqrt.pop %v987
        %v989 = vmul.f32 %v987, %v988
        %vm990 = vcmp.eq.f32.partialorder %v987, inf
        %v991 = vsel %vm990, %v987, %v989
        %vm992 = vcmp.eq.f32.partialorder %v987, 0.0
        %v993 = vand.u32 %v987, 2147483648
        %v994 = vsel %vm992, %v993, %v991
        %v995 = vsub.f32 %v994, %v978
        %v996 = vrcp.pop %v975
        %v997 = vmul.f32 0.5, %v996
        %v998 = vmul.f32 %v995, %v997
        %v999 = vstv %s366
        %v1000 = vadd.f32 %v998, %v999
        %v1001 = vmul.f32 %v962, %v1000
        %v1002 = vmul.f32 %v971, %v1000
        %v1003 = vmul.f32 %v1001, %v1001
        %v1004 = vmul.f32 %v1002, %v1002
        %v1005 = vadd.f32 %v1003, %v1004
        %v1006 = vmul.f32 %v998, %v998
        %v1007 = vadd.f32 %v1005, %v1006
        %v1008 = vmax.f32 %v1007, 1e-24
        %v1009 = vrsqrt.pop %v1008
        %v1010 = vmul.f32 %v393, %v1009
        %v1011 = vmul.f32 %v1001, %v1010
        %v1012 = vmul.f32 %v1002, %v1010
        %v1013 = vmul.f32 %v998, %v1010
        %v1014 = vstv %s368
        %v1015 = vmul.f32 %v1014, %v1011
        %v1016 = vstv %s370
        %v1017 = vmul.f32 %v1016, %v1012
        %v1018 = vadd.f32 %v1015, %v1017
        %v1019 = vstv %s372
        %v1020 = vmul.f32 %v1019, %v1013
        %v1021 = vadd.f32 %v1018, %v1020
        %v1022 = vstv %s386
        %v1023 = vadd.f32 %v1021, %v1022
        %v1024 = vstv %s374
        %v1025 = vmul.f32 %v1024, %v1011
        %v1026 = vstv %s376
        %v1027 = vmul.f32 %v1026, %v1012
        %v1028 = vadd.f32 %v1025, %v1027
        %v1029 = vstv %s378
        %v1030 = vmul.f32 %v1029, %v1013
        %v1031 = vadd.f32 %v1028, %v1030
        %v1032 = vstv %s388
        %v1033 = vadd.f32 %v1031, %v1032
        %v1034 = vstv %s380
        %v1035 = vmul.f32 %v1034, %v1011
        %v1036 = vstv %s382
        %v1037 = vmul.f32 %v1036, %v1012
        %v1038 = vadd.f32 %v1035, %v1037
        %v1039 = vstv %s384
        %v1040 = vmul.f32 %v1039, %v1013
        %v1041 = vadd.f32 %v1038, %v1040
        %v1042 = vstv %s390
        %v1043 = vadd.f32 %v1041, %v1042
        %v1044 = vrcp.pop 16.0
        %s1045 = vtos %v1044
        %s1046 = smul.f32 %s354, %s1045
        %s1047 = sfloor.f32 %s1046
        %v1048 = vrcp.pop 16.0
        %s1049 = vtos %v1048
        %s1050 = smul.f32 %s356, %s1049
        %s1051 = sfloor.f32 %s1050
        %v1052 = vld [vmem:[%s344] sm:$0x3]
        %v1053 = vstv %s1047
        %v1054 = vsub.f32 %v1052, %v1053
        %v1055 = vmul.f32 %v1054, %v1054
        %v1056 = vld [vmem:[%s348] sm:$0x3]
        %v1057 = vstv %s1051
        %v1058 = vsub.f32 %v1056, %v1057
        %v1059 = vmul.f32 %v1058, %v1058
        %v1060 = vadd.f32 %v1055, %v1059
        %vm1061 = vcmp.ge.f32.partialorder %v1060, 9.0
        %v1062 = vsel %vm1061, -1000.0, %v1023
        %v1063 = vsel %vm1061, -1000.0, %v1033
        %v1064 = vsel %vm1061, -1000.0, %v1043
        %v1065 = vsub.f32 0.0, %v1062
        %1066 = vst [vmem:[%s336] sm:$0x3] %v1065
        %s1067 = scalar_lea.vmem %s336, 2 [#allocation9]
        %1068 = vst [vmem:[%s1067] sm:$0x3] %v1063
        %s1069 = scalar_lea.vmem %s336, 4 [#allocation9]
        %1070 = vst [vmem:[%s1069] sm:$0x3] %v1064
        %s1071 = sand.u32 %s196, 1
        %s1072 = scalar_lea.sflag [#allocation4], %s1071
        %s1073 = sand.u32 %s196, 1
        %s1074 = smul.addr %s1073, 6
        %s1075 = scalar_lea.vmem [#allocation9], %s1074
        // Predicated region
        $region57: #{tpu_custom_call.1} parent=43 // pred_check
          %p1076 = pneg %p206
        $region58: #{tpu_custom_call.1} parent=43 // pred_check_branch
          %1078 = sbr.rel (%p1076) target = $region60
        $region59: #{tpu_custom_call.1} parent=43 // pred_region
          %s1080 = ssub.s32 96, 96
          %1081 = vsyncadd %s1072, %s1080
          %s1082 = smul.addr %s27, 3
          %s1083 = sadd.s32 %s28, %s1082
          %s1084 = smul.addr %s1083, 32
          %s1085 = scalar_lea.hbm %s6, %s1084
          %s1086 = sshll.u32 %s1075, 4
          %s1087 = int_to_ptr.vmem [resolvable:$true] %s1086
          %1092 = dma.vmem_to_hbm [thread:$0]  %s1087, 96, %s1085, %s1072, 32, 32, 2
        $region60: #{tpu_custom_call.1} parent=43 // pred_fallthru
          _
      $region44: #{tpu_custom_call.1} parent=5 // pred_fallthru
        _
      %p1093 = scmp.le.s32.totalorder 2, %s18
      // Predicated region
      $region61: #{tpu_custom_call.1} parent=5 // pred_check
        %p1094 = pneg %p1093
      $region62: #{tpu_custom_call.1} parent=5 // pred_check_branch
        %1096 = sbr.rel (%p1094) target = $region64
      $region63: #{tpu_custom_call.1} parent=5 // pred_region
        %s1097 = ssub.s32 %s18, 2
        // Predicated region
        $region65: #{tpu_custom_call.1} parent=63 // pred_check
          %p1098 = pneg %p212
        $region66: #{tpu_custom_call.1} parent=63 // pred_check_branch
          %1100 = sbr.rel (%p1098) target = $region68
        $region67: #{tpu_custom_call.1} parent=63 // pred_region
          %s1101 = sand.u32 %s197, 1
          %s1102 = scalar_lea.sflag [#allocation4], %s1101
          %s1103 = sand.u32 %s197, 1
          %s1104 = smul.addr %s1103, 6
          %s1105 = scalar_lea.vmem [#allocation9], %s1104
          %1106 = dma.done %s1102, 96
        $region68: #{tpu_custom_call.1} parent=63 // pred_fallthru
          _
      $region64: #{tpu_custom_call.1} parent=5 // pred_fallthru
        _
    $region6: #{tpu_custom_call.1} parent=1 // loop_footer
      %s22 = sadd.s32 1, %s18
    $region7: #{tpu_custom_call.1} parent=1 // loop_footer_branch
      %17 = sbr.rel target = $region3
    $region8: #{tpu_custom_call.1} parent=1 // loop_exit
      _
    %1107 = vsyncpa [#allocation3], 1
    %s1108 = scalar_lea.sflag [#allocation3], 1
    %1109 = vsyncpa %s1108, 1
    %1110 = vsyncpa [#allocation7], 1
    %1111 = vsyncpa [#allocation4], 1
    %s1112 = scalar_lea.sflag [#allocation4], 1
    %1113 = vsyncpa %s1112, 1
    %1114 = vsyncpa [#allocation5], 1
    %s1115 = scalar_lea.sflag [#allocation5], 1
    %1116 = vsyncpa %s1115, 1

</llo_original>
